<compile_context>
chip_gen: v5e
topology: v5e:2x2
jax: 0.10.0
libtpu: 0.0.40
codegen_flags: <defaults>
</compile_context>

<pallas_src>
import jax
import jax.numpy as jnp
from jax.experimental import pallas as pl
from jax.experimental.pallas import tpu as pltpu


def _silu_f32(v):
    # SiLU via sigmoid(v) = 0.5 * (1 + tanh(v/2)): a single EUP op (tanh)
    # per activation; the mul/adds sit on the VALU slots.
    return v * (0.5 * (1.0 + jnp.tanh(0.5 * v)))


def residual_layer_kernel(x_ref, w1_ref, b1_ref, w2_ref, b2_ref, o_ref):
    x = x_ref[...]                                     # [tn, H], I/O dtype
    xm = x if x.dtype == w1_ref.dtype else x.astype(w1_ref.dtype)
    h = jnp.dot(xm, w1_ref[...], preferred_element_type=jnp.float32)
    h = _silu_f32(h + b1_ref[...])
    h = jnp.dot(h.astype(w2_ref.dtype), w2_ref[...],
                preferred_element_type=jnp.float32)
    h = _silu_f32(h + b2_ref[...])
    if o_ref.dtype == jnp.float32:
        o_ref[...] = x.astype(jnp.float32) + h
    else:
        # bf16 I/O: residual add in the output dtype (one extra bf16 rounding,
        # saves a full-tile f32 upcast + f32 add on the VALU).
        o_ref[...] = x.astype(o_ref.dtype) + h.astype(o_ref.dtype)


def _is_v7x():
    try:
        return "v7" in jax.devices()[0].device_kind.lower()
    except Exception:
        return False


def _physical_vmem_bytes():
    try:
        return int(pltpu.get_tpu_info().vmem_capacity_bytes)
    except Exception:
        return 64 * 1024 * 1024          # conservative default (v7x per-TC)


def _pick_tn(N, H, x_dtype, vmem_budget_bytes=24 * 1024 * 1024):
    """Largest row tile that fits the VMEM budget (sublane-aligned)."""
    itemsize = jnp.dtype(x_dtype).itemsize
    w_bytes = 2 * 2 * H * H * 2                       # bf16 W1/W2, double-buffered
    # Per row: x + out tiles (3-deep pipeline) and three f32 temporaries
    # (two activations + the f32 residual/upcast).
    per_row = 2 * 3 * H * itemsize + 3 * H * 4
    avail = max(vmem_budget_bytes - w_bytes, 8 * per_row)
    cap = 8192 if itemsize <= 2 else 4096
    tn = max(8, min(cap, avail // per_row))
    tn = (tn // 8) * 8                                # sublane alignment
    tn = min(tn, ((N + 7) // 8) * 8)                  # never wider than the problem
    return max(8, tn)


def _vmem_limit(tn, H, x_dtype, mxu_dtype, buffers):
    x_isz = jnp.dtype(x_dtype).itemsize
    m_isz = jnp.dtype(mxu_dtype).itemsize
    nbuf = buffers if buffers is not None else 2
    est = (2 * 2 * H * H * m_isz                      # W1, W2 (double-buffered)
           + 2 * 2 * H * 4                            # biases
           + 2 * nbuf * tn * H * x_isz                # x + out tiles
           + 3 * tn * H * 4)                          # f32 temporaries
    cap = (_physical_vmem_bytes() * 3) // 4           # chip-aware headroom
    return int(min(cap, max(32 * 1024 * 1024, (est * 3) // 2)))


def _block_spec(shape, index_map, buffers=None):
    if buffers is not None:
        try:
            return pl.BlockSpec(shape, index_map,
                                pipeline_mode=pl.Buffered(buffers))
        except TypeError:
            pass
    return pl.BlockSpec(shape, index_map)


def residual_layer(x, w1, b1, w2, b2, *, tn=None, mxu_dtype=jnp.bfloat16):
    """x: [N, H]; w1, w2: [H, H] laid out [in, out]; b1, b2: [H]."""
    N, H = x.shape
    mxu_dtype = jnp.dtype(mxu_dtype)
    if tn is None:
        tn = _pick_tn(N, H, x.dtype)

    n_steps = -(-N // tn)
    # v7x only (2 TensorCores/chip): keep >= 2 grid steps so both TCs get
    # work.  On v5e/v6e splitting a single-tile problem just adds overhead.
    if _is_v7x() and n_steps == 1 and N >= 16:
        tn = max(8, ((-(-N // 2)) + 7) // 8 * 8)
        n_steps = -(-N // tn)

    # MXU-native bf16 operands (f32 accumulation kept); halves weight DMA.
    w1 = w1.astype(mxu_dtype)
    w2 = w2.astype(mxu_dtype)
    b1 = b1.reshape(1, H).astype(jnp.float32)
    b2 = b2.reshape(1, H).astype(jnp.float32)

    # Deepen the streamed x/out pipeline once the grid is long enough.
    buffers = 3 if n_steps >= 2 else None
    vmem_limit = _vmem_limit(tn, H, x.dtype, mxu_dtype, buffers)

    # No padding / slicing: grid = cdiv(N, tn); Pallas clips the last partial
    # block (garbage in the OOB rows never reaches the (masked) output store).
    return pl.pallas_call(
        residual_layer_kernel,
        out_shape=jax.ShapeDtypeStruct((N, H), x.dtype),
        grid_spec=pltpu.PrefetchScalarGridSpec(
            num_scalar_prefetch=0,
            grid=(n_steps,),
            in_specs=[
                _block_spec((tn, H), lambda i: (i, 0), buffers),  # x (streamed)
                pl.BlockSpec((H, H), lambda i: (0, 0)),           # W1 (resident)
                pl.BlockSpec((1, H), lambda i: (0, 0)),           # b1
                pl.BlockSpec((H, H), lambda i: (0, 0)),           # W2 (resident)
                pl.BlockSpec((1, H), lambda i: (0, 0)),           # b2
            ],
            out_specs=_block_spec((tn, H), lambda i: (i, 0), buffers),
        ),
        compiler_params=pltpu.CompilerParams(
            dimension_semantics=("parallel",),
            vmem_limit_bytes=vmem_limit,
        ),
    )(x, w1, b1, w2, b2)


def _init_params(key, hidden):
    # Deterministic synthetic init (stand-in for glorot_orthogonal; biases = 0,
    # matching reset_parameters' bias fill).
    k1, k2 = jax.random.split(key)
    scale = jnp.sqrt(2.0 / (hidden + hidden))
    # PyTorch Linear weight is [out, in]; store transposed [in, out] for x @ W.
    w1 = jax.random.normal(k1, (hidden, hidden), jnp.float32) * scale
    w2 = jax.random.normal(k2, (hidden, hidden), jnp.float32) * scale
    b1 = jnp.zeros((hidden,), jnp.float32)
    b2 = jnp.zeros((hidden,), jnp.float32)
    return w1, b1, w2, b2


def _reference(x, w1, b1, w2, b2, mxu_dtype=jnp.bfloat16):
    # Mirrors the kernel's dtype flow: bf16 MXU operands, f32 accumulation,
    # residual added in the output dtype.
    out_dtype = x.dtype
    xm = x.astype(mxu_dtype)
    h = jnp.dot(xm, w1.astype(mxu_dtype), preferred_element_type=jnp.float32) + b1
    h = jax.nn.silu(h)
    h = jnp.dot(h.astype(mxu_dtype), w2.astype(mxu_dtype),
                preferred_element_type=jnp.float32) + b2
    h = jax.nn.silu(h)
    if out_dtype == jnp.float32:
        return x + h
    return x.astype(out_dtype) + h.astype(out_dtype)


if __name__ == "__main__":
    key = jax.random.PRNGKey(0)
    kx, kp = jax.random.split(key)

    H = 128                    # DimeNet++ default hidden_channels (lane-dense)
    w1, b1, w2, b2 = _init_params(kp, H)

    # Case 1: f32 I/O, auto tile (single big tile; split across TCs on v7x).
    N1 = 512
    x1 = jax.random.normal(kx, (N1, H), jnp.float32)
    out1 = jax.block_until_ready(residual_layer(x1, w1, b1, w2, b2))
    ref1 = _reference(x1, w1, b1, w2, b2)
    assert out1.shape == (N1, H) and out1.dtype == jnp.float32
    assert jnp.allclose(out1, ref1, atol=5e-3, rtol=5e-3), "f32 mismatch"

    # Case 2: f32 I/O, ragged N with a forced small tile -> 3 grid steps with a
    # partial last block (exercises Pallas block clipping, no pad/slice).
    N2 = 300
    x2 = jax.random.normal(jax.random.fold_in(kx, 1), (N2, H), jnp.float32)
    out2 = jax.block_until_ready(residual_layer(x2, w1, b1, w2, b2, tn=128))
    ref2 = _reference(x2, w1, b1, w2, b2)
    assert out2.shape == (N2, H)
    assert jnp.allclose(out2, ref2, atol=5e-3, rtol=5e-3), "ragged f32 mismatch"

    # Case 3: bf16 I/O (MXU-native operands), ragged N, auto tile.
    N3 = 200
    x3 = jax.random.normal(jax.random.fold_in(kx, 2), (N3, H), jnp.float32)
    x3 = x3.astype(jnp.bfloat16)
    out3 = jax.block_until_ready(residual_layer(x3, w1, b1, w2, b2))
    ref3 = _reference(x3, w1, b1, w2, b2)
    assert out3.shape == (N3, H) and out3.dtype == jnp.bfloat16
    assert jnp.allclose(out3.astype(jnp.float32), ref3.astype(jnp.float32),
                        atol=5e-2, rtol=5e-2), "bf16 mismatch"

    print("KERNEL_OK")
</pallas_src>

<mosaic_0001>
module attributes {stable_mosaic.version = 11 : i64} {
  func.func @residual_layer_kernel(%arg0: i32, %arg1: memref<512x128xf32, #tpu.memory_space<vmem>>, %arg2: memref<128x128xbf16, #tpu.memory_space<vmem>>, %arg3: memref<1x128xf32, #tpu.memory_space<vmem>>, %arg4: memref<128x128xbf16, #tpu.memory_space<vmem>>, %arg5: memref<1x128xf32, #tpu.memory_space<vmem>>, %arg6: memref<512x128xf32, #tpu.memory_space<vmem>>) attributes {dimension_semantics = [#tpu.dimension_semantics<parallel>], iteration_bounds = array<i64: 1>, scalar_prefetch = 0 : i64, scratch_operands = 0 : i64, tpu.core_type = #tpu.core_type<tc>, window_params = [{transform_indices = @transform_0, window_bounds = array<i64: 512, 128>}, {pipeline_mode = #tpu.pipeline_mode<synchronous>, transform_indices = @transform_1, window_bounds = array<i64: 128, 128>}, {pipeline_mode = #tpu.pipeline_mode<synchronous>, transform_indices = @transform_2, window_bounds = array<i64: 1, 128>}, {pipeline_mode = #tpu.pipeline_mode<synchronous>, transform_indices = @transform_3, window_bounds = array<i64: 128, 128>}, {pipeline_mode = #tpu.pipeline_mode<synchronous>, transform_indices = @transform_4, window_bounds = array<i64: 1, 128>}, {transform_indices = @transform_5, window_bounds = array<i64: 512, 128>}]} {
    %c0 = arith.constant 0 : index
    %c0_0 = arith.constant 0 : index
    %0 = vector.load %arg1[%c0, %c0_0] : memref<512x128xf32, #tpu.memory_space<vmem>>, vector<512x128xf32>
    %1 = arith.truncf %0 : vector<512x128xf32> to vector<512x128xbf16>
    %c0_1 = arith.constant 0 : index
    %c0_2 = arith.constant 0 : index
    %2 = vector.load %arg2[%c0_1, %c0_2] : memref<128x128xbf16, #tpu.memory_space<vmem>>, vector<128x128xbf16>
    %cst = arith.constant dense<0.000000e+00> : vector<512x128xf32>
    %3 = tpu.matmul %1, %2, %cst {dimension_numbers = #tpu.dot_dimension_numbers<[1], [0], [0], [1], [0, 0, 1, 1], [], []>} : vector<512x128xbf16>, vector<128x128xbf16>, vector<512x128xf32> -> vector<512x128xf32>
    %c0_3 = arith.constant 0 : index
    %c0_4 = arith.constant 0 : index
    %4 = vector.load %arg3[%c0_3, %c0_4] : memref<1x128xf32, #tpu.memory_space<vmem>>, vector<1x128xf32>
    %5 = vector.broadcast %4 : vector<1x128xf32> to vector<512x128xf32>
    %6 = arith.addf %3, %5 : vector<512x128xf32>
    %cst_5 = arith.constant 5.000000e-01 : f32
    %7 = vector.broadcast %cst_5 : f32 to vector<512x128xf32>
    %8 = arith.mulf %7, %6 : vector<512x128xf32>
    %9 = math.tanh %8 : vector<512x128xf32>
    %cst_6 = arith.constant 1.000000e+00 : f32
    %10 = vector.broadcast %cst_6 : f32 to vector<512x128xf32>
    %11 = arith.addf %10, %9 : vector<512x128xf32>
    %cst_7 = arith.constant 5.000000e-01 : f32
    %12 = vector.broadcast %cst_7 : f32 to vector<512x128xf32>
    %13 = arith.mulf %12, %11 : vector<512x128xf32>
    %14 = arith.mulf %6, %13 : vector<512x128xf32>
    %15 = arith.truncf %14 : vector<512x128xf32> to vector<512x128xbf16>
    %c0_8 = arith.constant 0 : index
    %c0_9 = arith.constant 0 : index
    %16 = vector.load %arg4[%c0_8, %c0_9] : memref<128x128xbf16, #tpu.memory_space<vmem>>, vector<128x128xbf16>
    %cst_10 = arith.constant dense<0.000000e+00> : vector<512x128xf32>
    %17 = tpu.matmul %15, %16, %cst_10 {dimension_numbers = #tpu.dot_dimension_numbers<[1], [0], [0], [1], [0, 0, 1, 1], [], []>} : vector<512x128xbf16>, vector<128x128xbf16>, vector<512x128xf32> -> vector<512x128xf32>
    %c0_11 = arith.constant 0 : index
    %c0_12 = arith.constant 0 : index
    %18 = vector.load %arg5[%c0_11, %c0_12] : memref<1x128xf32, #tpu.memory_space<vmem>>, vector<1x128xf32>
    %19 = vector.broadcast %18 : vector<1x128xf32> to vector<512x128xf32>
    %20 = arith.addf %17, %19 : vector<512x128xf32>
    %cst_13 = arith.constant 5.000000e-01 : f32
    %21 = vector.broadcast %cst_13 : f32 to vector<512x128xf32>
    %22 = arith.mulf %21, %20 : vector<512x128xf32>
    %23 = math.tanh %22 : vector<512x128xf32>
    %cst_14 = arith.constant 1.000000e+00 : f32
    %24 = vector.broadcast %cst_14 : f32 to vector<512x128xf32>
    %25 = arith.addf %24, %23 : vector<512x128xf32>
    %cst_15 = arith.constant 5.000000e-01 : f32
    %26 = vector.broadcast %cst_15 : f32 to vector<512x128xf32>
    %27 = arith.mulf %26, %25 : vector<512x128xf32>
    %28 = arith.mulf %20, %27 : vector<512x128xf32>
    %29 = arith.addf %0, %28 : vector<512x128xf32>
    %c0_16 = arith.constant 0 : index
    %c0_17 = arith.constant 0 : index
    %30 = vector.load %arg6[%c0_16, %c0_17] : memref<512x128xf32, #tpu.memory_space<vmem>>, vector<512x128xf32>
    tpu.vector_store %arg6[%c0_16, %c0_17], %29 {strides = array<i32>} : memref<512x128xf32, #tpu.memory_space<vmem>>, vector<512x128xf32>,
    return
  }
  func.func @transform_0(%arg0: i32) -> (i32, i32) {
    %c0_i32 = arith.constant 0 : i32
    %c0_i32_0 = arith.constant 0 : i32
    return %arg0, %c0_i32 : i32, i32
  }
  func.func @transform_1(%arg0: i32) -> (i32, i32) {
    %c0_i32 = arith.constant 0 : i32
    %c0_i32_0 = arith.constant 0 : i32
    %c0_i32_1 = arith.constant 0 : i32
    return %c0_i32, %c0_i32_0 : i32, i32
  }
  func.func @transform_2(%arg0: i32) -> (i32, i32) {
    %c0_i32 = arith.constant 0 : i32
    %c0_i32_0 = arith.constant 0 : i32
    %c0_i32_1 = arith.constant 0 : i32
    return %c0_i32, %c0_i32_0 : i32, i32
  }
  func.func @transform_3(%arg0: i32) -> (i32, i32) {
    %c0_i32 = arith.constant 0 : i32
    %c0_i32_0 = arith.constant 0 : i32
    %c0_i32_1 = arith.constant 0 : i32
    return %c0_i32, %c0_i32_0 : i32, i32
  }
  func.func @transform_4(%arg0: i32) -> (i32, i32) {
    %c0_i32 = arith.constant 0 : i32
    %c0_i32_0 = arith.constant 0 : i32
    %c0_i32_1 = arith.constant 0 : i32
    return %c0_i32, %c0_i32_0 : i32, i32
  }
  func.func @transform_5(%arg0: i32) -> (i32, i32) {
    %c0_i32 = arith.constant 0 : i32
    %c0_i32_0 = arith.constant 0 : i32
    return %arg0, %c0_i32 : i32, i32
  }
}

</mosaic_0001>

<llo_original>
// kernel: tpu_custom_call.1
$region0: #{tpu_custom_call.1}
  #allocation0 [shape = 'u32[]', space=smem, size = 0x4, offset = 0x4, fixed_abs, tag = 'smem constant byte address 0x4 - core index']
  #allocation1 [shape = 'u32[72,128]{1,0:T(1,128)}', space=vmem, size = 0x9000, scoped, tag = 'internal scratch']
  %s0 = inlined_call_operand.hbm [shape: f32[512,128], index: 0, kind: input, shape index: {}]
  %s1 = inlined_call_operand.hbm [shape: bf16[128,128], index: 1, kind: input, shape index: {}]
  %s2 = inlined_call_operand.vmem [shape: f32[1,128], index: 2, kind: input, shape index: {}]
  %s3 = inlined_call_operand.hbm [shape: bf16[128,128], index: 3, kind: input, shape index: {}]
  %s4 = inlined_call_operand.vmem [shape: f32[1,128], index: 4, kind: input, shape index: {}]
  %s5 = inlined_call_operand.hbm [shape: f32[512,128], index: 5, kind: output, shape index: {}]
  %s6 = sld [smem:[#allocation0]]
  $region42: #{tpu_custom_call.1} parent=0
    _
  %s8 = ssub.s32 1, %s6
  %s9 = scalar_select 0, %s8, %s6
  $region1: #{tpu_custom_call.1} parent=0
    #allocation2 [shape = 'u8[262144]{0}', space=vmem, size = 0x40000, scoped, tag = 'input window, operand 0, single buffered']
    #allocation3 [shape = 's32[1]{0}', space=sflag, size = 0x4, scoped, tag = 'scoped memory for tpu_custom_call.1']
    #allocation4 [shape = 's32[1]{0}', space=sflag, size = 0x4, scoped, tag = 'scoped memory for tpu_custom_call.1']
    #allocation5 [shape = 'u8[32768]{0}', space=vmem, size = 0x8000, scoped, tag = 'input window, operand 1, single buffered']
    #allocation6 [shape = 's32[1]{0}', space=sflag, size = 0x4, scoped, tag = 'scoped memory for tpu_custom_call.1']
    #allocation7 [shape = 'u8[32768]{0}', space=vmem, size = 0x8000, scoped, tag = 'input window, operand 3, single buffered']
    #allocation8 [shape = 'u8[262144]{0}', space=vmem, size = 0x40000, scoped, tag = 'output window, operand 0, single buffered']
    %10 = vsyncpa [#allocation3], 0
    %11 = vsyncpa [#allocation6], 0
    %12 = vsyncpa [#allocation4], 0
    // Predicated region
    $region2: #{tpu_custom_call.1} parent=1 // pred_check
      _
    $region3: #{tpu_custom_call.1} parent=1 // pred_check_branch
      %14 = sbr.rel (0) target = $region5
    $region4: #{tpu_custom_call.1} parent=1 // pred_region
      %16 = vsyncadd [#allocation3], 0
      %s17 = sshll.u32 %s0, 4
      %s18 = int_to_ptr.hbm [resolvable:$true] %s17
      %s19 = sshll.u32 [#allocation2], 4
      %s20 = int_to_ptr.vmem [resolvable:$true] %s19
      %25 = dma.hbm_to_vmem [thread:$0]  %s18, 8192, %s20, [#allocation3], 128, 128, 8
    $region5: #{tpu_custom_call.1} parent=1 // pred_fallthru
      _
    // Predicated region
    $region6: #{tpu_custom_call.1} parent=1 // pred_check
      _
    $region7: #{tpu_custom_call.1} parent=1 // pred_check_branch
      %27 = sbr.rel (0) target = $region9
    $region8: #{tpu_custom_call.1} parent=1 // pred_region
      %29 = vsyncadd [#allocation6], 0
      %s30 = sshll.u32 %s1, 4
      %s31 = int_to_ptr.hbm [resolvable:$true] %s30
      %s32 = sshll.u32 [#allocation5], 4
      %s33 = int_to_ptr.vmem [resolvable:$true] %s32
      %38 = dma.hbm_to_vmem [thread:$0]  %s31, 1024, %s33, [#allocation6], 64, 64, 4
    $region9: #{tpu_custom_call.1} parent=1 // pred_fallthru
      _
    // Predicated region
    $region10: #{tpu_custom_call.1} parent=1 // pred_check
      _
    $region11: #{tpu_custom_call.1} parent=1 // pred_check_branch
      %40 = sbr.rel (0) target = $region13
    $region12: #{tpu_custom_call.1} parent=1 // pred_region
      _
    $region13: #{tpu_custom_call.1} parent=1 // pred_fallthru
      _
    // Predicated region
    $region14: #{tpu_custom_call.1} parent=1 // pred_check
      _
    $region15: #{tpu_custom_call.1} parent=1 // pred_check_branch
      %42 = sbr.rel (0) target = $region17
    $region16: #{tpu_custom_call.1} parent=1 // pred_region
      %44 = vsyncadd [#allocation6], 0
      %s45 = sshll.u32 %s3, 4
      %s46 = int_to_ptr.hbm [resolvable:$true] %s45
      %s47 = sshll.u32 [#allocation7], 4
      %s48 = int_to_ptr.vmem [resolvable:$true] %s47
      %53 = dma.hbm_to_vmem [thread:$0]  %s46, 1024, %s48, [#allocation6], 64, 64, 4
    $region17: #{tpu_custom_call.1} parent=1 // pred_fallthru
      _
    // Predicated region
    $region18: #{tpu_custom_call.1} parent=1 // pred_check
      _
    $region19: #{tpu_custom_call.1} parent=1 // pred_check_branch
      %55 = sbr.rel (0) target = $region21
    $region20: #{tpu_custom_call.1} parent=1 // pred_region
      _
    $region21: #{tpu_custom_call.1} parent=1 // pred_fallthru
      _
    // Predicated region
    $region22: #{tpu_custom_call.1} parent=1 // pred_check
      _
    $region23: #{tpu_custom_call.1} parent=1 // pred_check_branch
      %57 = sbr.rel (0) target = $region25
    $region24: #{tpu_custom_call.1} parent=1 // pred_region
      %59 = dma.done [#allocation3], 8192
    $region25: #{tpu_custom_call.1} parent=1 // pred_fallthru
      _
    // Predicated region
    $region26: #{tpu_custom_call.1} parent=1 // pred_check
      _
    $region27: #{tpu_custom_call.1} parent=1 // pred_check_branch
      %61 = sbr.rel (0) target = $region29
    $region28: #{tpu_custom_call.1} parent=1 // pred_region
      %63 = dma.done [#allocation6], 1024
    $region29: #{tpu_custom_call.1} parent=1 // pred_fallthru
      _
    // Predicated region
    $region30: #{tpu_custom_call.1} parent=1 // pred_check
      _
    $region31: #{tpu_custom_call.1} parent=1 // pred_check_branch
      %65 = sbr.rel (0) target = $region33
    $region32: #{tpu_custom_call.1} parent=1 // pred_region
      %67 = dma.done [#allocation6], 1024
    $region33: #{tpu_custom_call.1} parent=1 // pred_fallthru
      _
    %v68 = vld [vmem:[#allocation2] sm:$0xff]
    %v69 = vld [vmem:[#allocation2 + $0x8] sm:$0xff]
    %v70 = vld [vmem:[#allocation2 + $0x10] sm:$0xff]
    %v71 = vld [vmem:[#allocation2 + $0x18] sm:$0xff]
    %v72 = vld [vmem:[#allocation2 + $0x20] sm:$0xff]
    %v73 = vld [vmem:[#allocation2 + $0x28] sm:$0xff]
    %v74 = vld [vmem:[#allocation2 + $0x30] sm:$0xff]
    %v75 = vld [vmem:[#allocation2 + $0x38] sm:$0xff]
    %v76 = vld [vmem:[#allocation2 + $0x40] sm:$0xff]
    %v77 = vld [vmem:[#allocation2 + $0x48] sm:$0xff]
    %v78 = vld [vmem:[#allocation2 + $0x50] sm:$0xff]
    %v79 = vld [vmem:[#allocation2 + $0x58] sm:$0xff]
    %v80 = vld [vmem:[#allocation2 + $0x60] sm:$0xff]
    %v81 = vld [vmem:[#allocation2 + $0x68] sm:$0xff]
    %v82 = vld [vmem:[#allocation2 + $0x70] sm:$0xff]
    %v83 = vld [vmem:[#allocation2 + $0x78] sm:$0xff]
    %v84 = vld [vmem:[#allocation2 + $0x80] sm:$0xff]
    %v85 = vld [vmem:[#allocation2 + $0x88] sm:$0xff]
    %v86 = vld [vmem:[#allocation2 + $0x90] sm:$0xff]
    %v87 = vld [vmem:[#allocation2 + $0x98] sm:$0xff]
    %v88 = vld [vmem:[#allocation2 + $0xa0] sm:$0xff]
    %v89 = vld [vmem:[#allocation2 + $0xa8] sm:$0xff]
    %v90 = vld [vmem:[#allocation2 + $0xb0] sm:$0xff]
    %v91 = vld [vmem:[#allocation2 + $0xb8] sm:$0xff]
    %v92 = vld [vmem:[#allocation2 + $0xc0] sm:$0xff]
    %v93 = vld [vmem:[#allocation2 + $0xc8] sm:$0xff]
    %v94 = vld [vmem:[#allocation2 + $0xd0] sm:$0xff]
    %v95 = vld [vmem:[#allocation2 + $0xd8] sm:$0xff]
    %v96 = vld [vmem:[#allocation2 + $0xe0] sm:$0xff]
    %v97 = vld [vmem:[#allocation2 + $0xe8] sm:$0xff]
    %v98 = vld [vmem:[#allocation2 + $0xf0] sm:$0xff]
    %v99 = vld [vmem:[#allocation2 + $0xf8] sm:$0xff]
    %v100 = vld [vmem:[#allocation2 + $0x100] sm:$0xff]
    %v101 = vld [vmem:[#allocation2 + $0x108] sm:$0xff]
    %v102 = vld [vmem:[#allocation2 + $0x110] sm:$0xff]
    %v103 = vld [vmem:[#allocation2 + $0x118] sm:$0xff]
    %v104 = vld [vmem:[#allocation2 + $0x120] sm:$0xff]
    %v105 = vld [vmem:[#allocation2 + $0x128] sm:$0xff]
    %v106 = vld [vmem:[#allocation2 + $0x130] sm:$0xff]
    %v107 = vld [vmem:[#allocation2 + $0x138] sm:$0xff]
    %v108 = vld [vmem:[#allocation2 + $0x140] sm:$0xff]
    %v109 = vld [vmem:[#allocation2 + $0x148] sm:$0xff]
    %v110 = vld [vmem:[#allocation2 + $0x150] sm:$0xff]
    %v111 = vld [vmem:[#allocation2 + $0x158] sm:$0xff]
    %v112 = vld [vmem:[#allocation2 + $0x160] sm:$0xff]
    %v113 = vld [vmem:[#allocation2 + $0x168] sm:$0xff]
    %v114 = vld [vmem:[#allocation2 + $0x170] sm:$0xff]
    %v115 = vld [vmem:[#allocation2 + $0x178] sm:$0xff]
    %v116 = vld [vmem:[#allocation2 + $0x180] sm:$0xff]
    %v117 = vld [vmem:[#allocation2 + $0x188] sm:$0xff]
    %v118 = vld [vmem:[#allocation2 + $0x190] sm:$0xff]
    %v119 = vld [vmem:[#allocation2 + $0x198] sm:$0xff]
    %v120 = vld [vmem:[#allocation2 + $0x1a0] sm:$0xff]
    %v121 = vld [vmem:[#allocation2 + $0x1a8] sm:$0xff]
    %v122 = vld [vmem:[#allocation2 + $0x1b0] sm:$0xff]
    %v123 = vld [vmem:[#allocation2 + $0x1b8] sm:$0xff]
    %v124 = vld [vmem:[#allocation2 + $0x1c0] sm:$0xff]
    %v125 = vld [vmem:[#allocation2 + $0x1c8] sm:$0xff]
    %v126 = vld [vmem:[#allocation2 + $0x1d0] sm:$0xff]
    %v127 = vld [vmem:[#allocation2 + $0x1d8] sm:$0xff]
    %v128 = vld [vmem:[#allocation2 + $0x1e0] sm:$0xff]
    %v129 = vld [vmem:[#allocation2 + $0x1e8] sm:$0xff]
    %v130 = vld [vmem:[#allocation2 + $0x1f0] sm:$0xff]
    %v131 = vld [vmem:[#allocation2 + $0x1f8] sm:$0xff]
    %v132 = vpack.c.bf16 %v69, %v68
    %v133 = vpack.c.bf16 %v71, %v70
    %v134 = vpack.c.bf16 %v73, %v72
    %v135 = vpack.c.bf16 %v75, %v74
    %v136 = vpack.c.bf16 %v77, %v76
    %v137 = vpack.c.bf16 %v79, %v78
    %v138 = vpack.c.bf16 %v81, %v80
    %v139 = vpack.c.bf16 %v83, %v82
    %v140 = vpack.c.bf16 %v85, %v84
    %v141 = vpack.c.bf16 %v87, %v86
    %v142 = vpack.c.bf16 %v89, %v88
    %v143 = vpack.c.bf16 %v91, %v90
    %v144 = vpack.c.bf16 %v93, %v92
    %v145 = vpack.c.bf16 %v95, %v94
    %v146 = vpack.c.bf16 %v97, %v96
    %v147 = vpack.c.bf16 %v99, %v98
    %v148 = vpack.c.bf16 %v101, %v100
    %v149 = vpack.c.bf16 %v103, %v102
    %v150 = vpack.c.bf16 %v105, %v104
    %v151 = vpack.c.bf16 %v107, %v106
    %v152 = vpack.c.bf16 %v109, %v108
    %v153 = vpack.c.bf16 %v111, %v110
    %v154 = vpack.c.bf16 %v113, %v112
    %v155 = vpack.c.bf16 %v115, %v114
    %v156 = vpack.c.bf16 %v117, %v116
    %v157 = vpack.c.bf16 %v119, %v118
    %v158 = vpack.c.bf16 %v121, %v120
    %v159 = vpack.c.bf16 %v123, %v122
    %v160 = vpack.c.bf16 %v125, %v124
    %v161 = vpack.c.bf16 %v127, %v126
    %v162 = vpack.c.bf16 %v129, %v128
    %v163 = vpack.c.bf16 %v131, %v130
    %v164 = vld [vmem:[#allocation5] sm:$0xf]
    %v165 = vld [vmem:[#allocation5 + $0x4] sm:$0xf]
    %v166 = vld [vmem:[#allocation5 + $0x8] sm:$0xf]
    %v167 = vld [vmem:[#allocation5 + $0xc] sm:$0xf]
    %v168 = vld [vmem:[#allocation5 + $0x10] sm:$0xf]
    %v169 = vld [vmem:[#allocation5 + $0x14] sm:$0xf]
    %v170 = vld [vmem:[#allocation5 + $0x18] sm:$0xf]
    %v171 = vld [vmem:[#allocation5 + $0x1c] sm:$0xf]
    %v172 = vld [vmem:[#allocation5 + $0x20] sm:$0xf]
    %v173 = vld [vmem:[#allocation5 + $0x24] sm:$0xf]
    %v174 = vld [vmem:[#allocation5 + $0x28] sm:$0xf]
    %v175 = vld [vmem:[#allocation5 + $0x2c] sm:$0xf]
    %v176 = vld [vmem:[#allocation5 + $0x30] sm:$0xf]
    %v177 = vld [vmem:[#allocation5 + $0x34] sm:$0xf]
    %v178 = vld [vmem:[#allocation5 + $0x38] sm:$0xf]
    %v179 = vld [vmem:[#allocation5 + $0x3c] sm:$0xf]
    %v180 = vld [vmem:[%s2] sm:$0x1]
    %v182 = vperm.slane %v180, 0
    %v200 = vunpack.c.l.b16 %v164
    %v201 = vunpack.c.l.b16 %v165
    %v202 = vunpack.c.l.b16 %v166
    %v203 = vunpack.c.l.b16 %v167
    %v204 = vunpack.c.l.b16 %v168
    %v205 = vunpack.c.l.b16 %v169
    %v206 = vunpack.c.l.b16 %v170
    %v207 = vunpack.c.l.b16 %v171
    %v208 = vunpack.c.l.b16 %v172
    %v209 = vunpack.c.l.b16 %v173
    %v210 = vunpack.c.l.b16 %v174
    %v211 = vunpack.c.l.b16 %v175
    %v212 = vunpack.c.l.b16 %v176
    %v213 = vunpack.c.l.b16 %v177
    %v214 = vunpack.c.l.b16 %v178
    %v215 = vunpack.c.l.b16 %v179
    %v216 = vpack.c.b16 %v201, %v200
    %v217 = vpack.c.b16 %v203, %v202
    %v218 = vpack.c.b16 %v205, %v204
    %v219 = vpack.c.b16 %v207, %v206
    %v220 = vpack.c.b16 %v209, %v208
    %v221 = vpack.c.b16 %v211, %v210
    %v222 = vpack.c.b16 %v213, %v212
    %v223 = vpack.c.b16 %v215, %v214
    %232 = vmatpush.bf16.msra.mxu0 %v223
    %233 = vmatpush.bf16.msra.mxu0 %v222
    %234 = vmatpush.bf16.msra.mxu0 %v221
    %235 = vmatpush.bf16.msra.mxu0 %v220
    %236 = vmatpush.bf16.msra.mxu0 %v219
    %237 = vmatpush.bf16.msra.mxu0 %v218
    %238 = vmatpush.bf16.msra.mxu0 %v217
    %239 = vmatpush.bf16.msra.mxu0 %v216
    %240 = vmatmul.bf16.gmra.mxu0 %v132
    %v241 = vpop.f32.mrf.mxu0
    %v242 = vadd.f32 %v182, %v241
    %v243 = vpop.f32.mrf.mxu0
    %v244 = vadd.f32 %v182, %v243
    %245 = vmatmul.bf16.gmra.mxu0 %v133
    %v246 = vpop.f32.mrf.mxu0
    %v247 = vadd.f32 %v182, %v246
    %v248 = vpop.f32.mrf.mxu0
    %v249 = vadd.f32 %v182, %v248
    %250 = vmatmul.bf16.gmra.mxu0 %v134
    %v251 = vpop.f32.mrf.mxu0
    %v252 = vadd.f32 %v182, %v251
    %v253 = vpop.f32.mrf.mxu0
    %v254 = vadd.f32 %v182, %v253
    %255 = vmatmul.bf16.gmra.mxu0 %v135
    %v256 = vpop.f32.mrf.mxu0
    %v257 = vadd.f32 %v182, %v256
    %v258 = vpop.f32.mrf.mxu0
    %v259 = vadd.f32 %v182, %v258
    %260 = vmatmul.bf16.gmra.mxu0 %v136
    %v261 = vpop.f32.mrf.mxu0
    %v262 = vadd.f32 %v182, %v261
    %v263 = vpop.f32.mrf.mxu0
    %v264 = vadd.f32 %v182, %v263
    %265 = vmatmul.bf16.gmra.mxu0 %v137
    %v266 = vpop.f32.mrf.mxu0
    %v267 = vadd.f32 %v182, %v266
    %v268 = vpop.f32.mrf.mxu0
    %v269 = vadd.f32 %v182, %v268
    %270 = vmatmul.bf16.gmra.mxu0 %v138
    %v271 = vpop.f32.mrf.mxu0
    %v272 = vadd.f32 %v182, %v271
    %v273 = vpop.f32.mrf.mxu0
    %v274 = vadd.f32 %v182, %v273
    %275 = vmatmul.bf16.gmra.mxu0 %v139
    %v276 = vpop.f32.mrf.mxu0
    %v277 = vadd.f32 %v182, %v276
    %v278 = vpop.f32.mrf.mxu0
    %v279 = vadd.f32 %v182, %v278
    %280 = vmatmul.bf16.gmra.mxu0 %v140
    %v281 = vpop.f32.mrf.mxu0
    %v282 = vadd.f32 %v182, %v281
    %v283 = vpop.f32.mrf.mxu0
    %v284 = vadd.f32 %v182, %v283
    %285 = vmatmul.bf16.gmra.mxu0 %v141
    %v286 = vpop.f32.mrf.mxu0
    %v287 = vadd.f32 %v182, %v286
    %v288 = vpop.f32.mrf.mxu0
    %v289 = vadd.f32 %v182, %v288
    %290 = vmatmul.bf16.gmra.mxu0 %v142
    %v291 = vpop.f32.mrf.mxu0
    %v292 = vadd.f32 %v182, %v291
    %v293 = vpop.f32.mrf.mxu0
    %v294 = vadd.f32 %v182, %v293
    %295 = vmatmul.bf16.gmra.mxu0 %v143
    %v296 = vpop.f32.mrf.mxu0
    %v297 = vadd.f32 %v182, %v296
    %v298 = vpop.f32.mrf.mxu0
    %v299 = vadd.f32 %v182, %v298
    %300 = vmatmul.bf16.gmra.mxu0 %v144
    %v301 = vpop.f32.mrf.mxu0
    %v302 = vadd.f32 %v182, %v301
    %v303 = vpop.f32.mrf.mxu0
    %v304 = vadd.f32 %v182, %v303
    %305 = vmatmul.bf16.gmra.mxu0 %v145
    %v306 = vpop.f32.mrf.mxu0
    %v307 = vadd.f32 %v182, %v306
    %v308 = vpop.f32.mrf.mxu0
    %v309 = vadd.f32 %v182, %v308
    %310 = vmatmul.bf16.gmra.mxu0 %v146
    %v311 = vpop.f32.mrf.mxu0
    %v312 = vadd.f32 %v182, %v311
    %v313 = vpop.f32.mrf.mxu0
    %v314 = vadd.f32 %v182, %v313
    %315 = vmatmul.bf16.gmra.mxu0 %v147
    %v316 = vpop.f32.mrf.mxu0
    %v317 = vadd.f32 %v182, %v316
    %v318 = vpop.f32.mrf.mxu0
    %v319 = vadd.f32 %v182, %v318
    %320 = vmatmul.bf16.gmra.mxu0 %v148
    %v321 = vpop.f32.mrf.mxu0
    %v322 = vadd.f32 %v182, %v321
    %v323 = vpop.f32.mrf.mxu0
    %v324 = vadd.f32 %v182, %v323
    %325 = vmatmul.bf16.gmra.mxu0 %v149
    %v326 = vpop.f32.mrf.mxu0
    %v327 = vadd.f32 %v182, %v326
    %v328 = vpop.f32.mrf.mxu0
    %v329 = vadd.f32 %v182, %v328
    %330 = vmatmul.bf16.gmra.mxu0 %v150
    %v331 = vpop.f32.mrf.mxu0
    %v332 = vadd.f32 %v182, %v331
    %v333 = vpop.f32.mrf.mxu0
    %v334 = vadd.f32 %v182, %v333
    %335 = vmatmul.bf16.gmra.mxu0 %v151
    %v336 = vpop.f32.mrf.mxu0
    %v337 = vadd.f32 %v182, %v336
    %v338 = vpop.f32.mrf.mxu0
    %v339 = vadd.f32 %v182, %v338
    %340 = vmatmul.bf16.gmra.mxu0 %v152
    %v341 = vpop.f32.mrf.mxu0
    %v342 = vadd.f32 %v182, %v341
    %v343 = vpop.f32.mrf.mxu0
    %v344 = vadd.f32 %v182, %v343
    %345 = vmatmul.bf16.gmra.mxu0 %v153
    %v346 = vpop.f32.mrf.mxu0
    %v347 = vadd.f32 %v182, %v346
    %v348 = vpop.f32.mrf.mxu0
    %v349 = vadd.f32 %v182, %v348
    %350 = vmatmul.bf16.gmra.mxu0 %v154
    %v351 = vpop.f32.mrf.mxu0
    %v352 = vadd.f32 %v182, %v351
    %v353 = vpop.f32.mrf.mxu0
    %v354 = vadd.f32 %v182, %v353
    %355 = vmatmul.bf16.gmra.mxu0 %v155
    %v356 = vpop.f32.mrf.mxu0
    %v357 = vadd.f32 %v182, %v356
    %v358 = vpop.f32.mrf.mxu0
    %v359 = vadd.f32 %v182, %v358
    %360 = vmatmul.bf16.gmra.mxu0 %v156
    %v361 = vpop.f32.mrf.mxu0
    %v362 = vadd.f32 %v182, %v361
    %v363 = vpop.f32.mrf.mxu0
    %v364 = vadd.f32 %v182, %v363
    %365 = vmatmul.bf16.gmra.mxu0 %v157
    %v366 = vpop.f32.mrf.mxu0
    %v367 = vadd.f32 %v182, %v366
    %v368 = vpop.f32.mrf.mxu0
    %v369 = vadd.f32 %v182, %v368
    %370 = vmatmul.bf16.gmra.mxu0 %v158
    %v371 = vpop.f32.mrf.mxu0
    %v372 = vadd.f32 %v182, %v371
    %v373 = vpop.f32.mrf.mxu0
    %v374 = vadd.f32 %v182, %v373
    %375 = vmatmul.bf16.gmra.mxu0 %v159
    %v376 = vpop.f32.mrf.mxu0
    %v377 = vadd.f32 %v182, %v376
    %v378 = vpop.f32.mrf.mxu0
    %v379 = vadd.f32 %v182, %v378
    %380 = vmatmul.bf16.gmra.mxu0 %v160
    %v381 = vpop.f32.mrf.mxu0
    %v382 = vadd.f32 %v182, %v381
    %v383 = vpop.f32.mrf.mxu0
    %v384 = vadd.f32 %v182, %v383
    %385 = vmatmul.bf16.gmra.mxu0 %v161
    %v386 = vpop.f32.mrf.mxu0
    %v387 = vadd.f32 %v182, %v386
    %v388 = vpop.f32.mrf.mxu0
    %v389 = vadd.f32 %v182, %v388
    %390 = vmatmul.bf16.gmra.mxu0 %v162
    %v391 = vpop.f32.mrf.mxu0
    %v392 = vadd.f32 %v182, %v391
    %v393 = vpop.f32.mrf.mxu0
    %v394 = vadd.f32 %v182, %v393
    %395 = vmatmul.bf16.gmra.mxu0 %v163
    %v396 = vpop.f32.mrf.mxu0
    %v397 = vadd.f32 %v182, %v396
    %v398 = vpop.f32.mrf.mxu0
    %v399 = vadd.f32 %v182, %v398
    %400 = vdwg.mxu0
    %v401 = vmul.f32 %v242, 0.5
    %v402 = vmul.f32 %v244, 0.5
    %v403 = vmul.f32 %v247, 0.5
    %v404 = vmul.f32 %v249, 0.5
    %v405 = vmul.f32 %v252, 0.5
    %v406 = vmul.f32 %v254, 0.5
    %v407 = vmul.f32 %v257, 0.5
    %v408 = vmul.f32 %v259, 0.5
    %v409 = vmul.f32 %v262, 0.5
    %v410 = vmul.f32 %v264, 0.5
    %v411 = vmul.f32 %v267, 0.5
    %v412 = vmul.f32 %v269, 0.5
    %v413 = vmul.f32 %v272, 0.5
    %v414 = vmul.f32 %v274, 0.5
    %v415 = vmul.f32 %v277, 0.5
    %v416 = vmul.f32 %v279, 0.5
    %v417 = vmul.f32 %v282, 0.5
    %v418 = vmul.f32 %v284, 0.5
    %v419 = vmul.f32 %v287, 0.5
    %v420 = vmul.f32 %v289, 0.5
    %v421 = vmul.f32 %v292, 0.5
    %v422 = vmul.f32 %v294, 0.5
    %v423 = vmul.f32 %v297, 0.5
    %v424 = vmul.f32 %v299, 0.5
    %v425 = vmul.f32 %v302, 0.5
    %v426 = vmul.f32 %v304, 0.5
    %v427 = vmul.f32 %v307, 0.5
    %v428 = vmul.f32 %v309, 0.5
    %v429 = vmul.f32 %v312, 0.5
    %v430 = vmul.f32 %v314, 0.5
    %v431 = vmul.f32 %v317, 0.5
    %v432 = vmul.f32 %v319, 0.5
    %v433 = vmul.f32 %v322, 0.5
    %v434 = vmul.f32 %v324, 0.5
    %v435 = vmul.f32 %v327, 0.5
    %v436 = vmul.f32 %v329, 0.5
    %v437 = vmul.f32 %v332, 0.5
    %v438 = vmul.f32 %v334, 0.5
    %v439 = vmul.f32 %v337, 0.5
    %v440 = vmul.f32 %v339, 0.5
    %v441 = vmul.f32 %v342, 0.5
    %v442 = vmul.f32 %v344, 0.5
    %v443 = vmul.f32 %v347, 0.5
    %v444 = vmul.f32 %v349, 0.5
    %v445 = vmul.f32 %v352, 0.5
    %v446 = vmul.f32 %v354, 0.5
    %v447 = vmul.f32 %v357, 0.5
    %v448 = vmul.f32 %v359, 0.5
    %v449 = vmul.f32 %v362, 0.5
    %v450 = vmul.f32 %v364, 0.5
    %v451 = vmul.f32 %v367, 0.5
    %v452 = vmul.f32 %v369, 0.5
    %v453 = vmul.f32 %v372, 0.5
    %v454 = vmul.f32 %v374, 0.5
    %v455 = vmul.f32 %v377, 0.5
    %v456 = vmul.f32 %v379, 0.5
    %v457 = vmul.f32 %v382, 0.5
    %v458 = vmul.f32 %v384, 0.5
    %v459 = vmul.f32 %v387, 0.5
    %v460 = vmul.f32 %v389, 0.5
    %v461 = vmul.f32 %v392, 0.5
    %v462 = vmul.f32 %v394, 0.5
    %v463 = vmul.f32 %v397, 0.5
    %v464 = vmul.f32 %v399, 0.5
    %v465 = vtanh.pop %v401
    %v466 = vtanh.pop %v402
    %v467 = vtanh.pop %v403
    %v468 = vtanh.pop %v404
    %v469 = vtanh.pop %v405
    %v470 = vtanh.pop %v406
    %v471 = vtanh.pop %v407
    %v472 = vtanh.pop %v408
    %v473 = vtanh.pop %v409
    %v474 = vtanh.pop %v410
    %v475 = vtanh.pop %v411
    %v476 = vtanh.pop %v412
    %v477 = vtanh.pop %v413
    %v478 = vtanh.pop %v414
    %v479 = vtanh.pop %v415
    %v480 = vtanh.pop %v416
    %v481 = vtanh.pop %v417
    %v482 = vtanh.pop %v418
    %v483 = vtanh.pop %v419
    %v484 = vtanh.pop %v420
    %v485 = vtanh.pop %v421
    %v486 = vtanh.pop %v422
    %v487 = vtanh.pop %v423
    %v488 = vtanh.pop %v424
    %v489 = vtanh.pop %v425
    %v490 = vtanh.pop %v426
    %v491 = vtanh.pop %v427
    %v492 = vtanh.pop %v428
    %v493 = vtanh.pop %v429
    %v494 = vtanh.pop %v430
    %v495 = vtanh.pop %v431
    %v496 = vtanh.pop %v432
    %v497 = vtanh.pop %v433
    %v498 = vtanh.pop %v434
    %v499 = vtanh.pop %v435
    %v500 = vtanh.pop %v436
    %v501 = vtanh.pop %v437
    %v502 = vtanh.pop %v438
    %v503 = vtanh.pop %v439
    %v504 = vtanh.pop %v440
    %v505 = vtanh.pop %v441
    %v506 = vtanh.pop %v442
    %v507 = vtanh.pop %v443
    %v508 = vtanh.pop %v444
    %v509 = vtanh.pop %v445
    %v510 = vtanh.pop %v446
    %v511 = vtanh.pop %v447
    %v512 = vtanh.pop %v448
    %v513 = vtanh.pop %v449
    %v514 = vtanh.pop %v450
    %v515 = vtanh.pop %v451
    %v516 = vtanh.pop %v452
    %v517 = vtanh.pop %v453
    %v518 = vtanh.pop %v454
    %v519 = vtanh.pop %v455
    %v520 = vtanh.pop %v456
    %v521 = vtanh.pop %v457
    %v522 = vtanh.pop %v458
    %v523 = vtanh.pop %v459
    %v524 = vtanh.pop %v460
    %v525 = vtanh.pop %v461
    %v526 = vtanh.pop %v462
    %v527 = vtanh.pop %v463
    %v528 = vtanh.pop %v464
    %v529 = vadd.f32 %v465, 1.0
    %v530 = vadd.f32 %v466, 1.0
    %v531 = vadd.f32 %v467, 1.0
    %v532 = vadd.f32 %v468, 1.0
    %v533 = vadd.f32 %v469, 1.0
    %v534 = vadd.f32 %v470, 1.0
    %v535 = vadd.f32 %v471, 1.0
    %v536 = vadd.f32 %v472, 1.0
    %v537 = vadd.f32 %v473, 1.0
    %v538 = vadd.f32 %v474, 1.0
    %v539 = vadd.f32 %v475, 1.0
    %v540 = vadd.f32 %v476, 1.0
    %v541 = vadd.f32 %v477, 1.0
    %v542 = vadd.f32 %v478, 1.0
    %v543 = vadd.f32 %v479, 1.0
    %v544 = vadd.f32 %v480, 1.0
    %v545 = vadd.f32 %v481, 1.0
    %v546 = vadd.f32 %v482, 1.0
    %v547 = vadd.f32 %v483, 1.0
    %v548 = vadd.f32 %v484, 1.0
    %v549 = vadd.f32 %v485, 1.0
    %v550 = vadd.f32 %v486, 1.0
    %v551 = vadd.f32 %v487, 1.0
    %v552 = vadd.f32 %v488, 1.0
    %v553 = vadd.f32 %v489, 1.0
    %v554 = vadd.f32 %v490, 1.0
    %v555 = vadd.f32 %v491, 1.0
    %v556 = vadd.f32 %v492, 1.0
    %v557 = vadd.f32 %v493, 1.0
    %v558 = vadd.f32 %v494, 1.0
    %v559 = vadd.f32 %v495, 1.0
    %v560 = vadd.f32 %v496, 1.0
    %v561 = vadd.f32 %v497, 1.0
    %v562 = vadd.f32 %v498, 1.0
    %v563 = vadd.f32 %v499, 1.0
    %v564 = vadd.f32 %v500, 1.0
    %v565 = vadd.f32 %v501, 1.0
    %v566 = vadd.f32 %v502, 1.0
    %v567 = vadd.f32 %v503, 1.0
    %v568 = vadd.f32 %v504, 1.0
    %v569 = vadd.f32 %v505, 1.0
    %v570 = vadd.f32 %v506, 1.0
    %v571 = vadd.f32 %v507, 1.0
    %v572 = vadd.f32 %v508, 1.0
    %v573 = vadd.f32 %v509, 1.0
    %v574 = vadd.f32 %v510, 1.0
    %v575 = vadd.f32 %v511, 1.0
    %v576 = vadd.f32 %v512, 1.0
    %v577 = vadd.f32 %v513, 1.0
    %v578 = vadd.f32 %v514, 1.0
    %v579 = vadd.f32 %v515, 1.0
    %v580 = vadd.f32 %v516, 1.0
    %v581 = vadd.f32 %v517, 1.0
    %v582 = vadd.f32 %v518, 1.0
    %v583 = vadd.f32 %v519, 1.0
    %v584 = vadd.f32 %v520, 1.0
    %v585 = vadd.f32 %v521, 1.0
    %v586 = vadd.f32 %v522, 1.0
    %v587 = vadd.f32 %v523, 1.0
    %v588 = vadd.f32 %v524, 1.0
    %v589 = vadd.f32 %v525, 1.0
    %v590 = vadd.f32 %v526, 1.0
    %v591 = vadd.f32 %v527, 1.0
    %v592 = vadd.f32 %v528, 1.0
    %v593 = vmul.f32 %v529, 0.5
    %v594 = vmul.f32 %v530, 0.5
    %v595 = vmul.f32 %v531, 0.5
    %v596 = vmul.f32 %v532, 0.5
    %v597 = vmul.f32 %v533, 0.5
    %v598 = vmul.f32 %v534, 0.5
    %v599 = vmul.f32 %v535, 0.5
    %v600 = vmul.f32 %v536, 0.5
    %v601 = vmul.f32 %v537, 0.5
    %v602 = vmul.f32 %v538, 0.5
    %v603 = vmul.f32 %v539, 0.5
    %v604 = vmul.f32 %v540, 0.5
    %v605 = vmul.f32 %v541, 0.5
    %v606 = vmul.f32 %v542, 0.5
    %v607 = vmul.f32 %v543, 0.5
    %v608 = vmul.f32 %v544, 0.5
    %v609 = vmul.f32 %v545, 0.5
    %v610 = vmul.f32 %v546, 0.5
    %v611 = vmul.f32 %v547, 0.5
    %v612 = vmul.f32 %v548, 0.5
    %v613 = vmul.f32 %v549, 0.5
    %v614 = vmul.f32 %v550, 0.5
    %v615 = vmul.f32 %v551, 0.5
    %v616 = vmul.f32 %v552, 0.5
    %v617 = vmul.f32 %v553, 0.5
    %v618 = vmul.f32 %v554, 0.5
    %v619 = vmul.f32 %v555, 0.5
    %v620 = vmul.f32 %v556, 0.5
    %v621 = vmul.f32 %v557, 0.5
    %v622 = vmul.f32 %v558, 0.5
    %v623 = vmul.f32 %v559, 0.5
    %v624 = vmul.f32 %v560, 0.5
    %v625 = vmul.f32 %v561, 0.5
    %v626 = vmul.f32 %v562, 0.5
    %v627 = vmul.f32 %v563, 0.5
    %v628 = vmul.f32 %v564, 0.5
    %v629 = vmul.f32 %v565, 0.5
    %v630 = vmul.f32 %v566, 0.5
    %v631 = vmul.f32 %v567, 0.5
    %v632 = vmul.f32 %v568, 0.5
    %v633 = vmul.f32 %v569, 0.5
    %v634 = vmul.f32 %v570, 0.5
    %v635 = vmul.f32 %v571, 0.5
    %v636 = vmul.f32 %v572, 0.5
    %v637 = vmul.f32 %v573, 0.5
    %v638 = vmul.f32 %v574, 0.5
    %v639 = vmul.f32 %v575, 0.5
    %v640 = vmul.f32 %v576, 0.5
    %v641 = vmul.f32 %v577, 0.5
    %v642 = vmul.f32 %v578, 0.5
    %v643 = vmul.f32 %v579, 0.5
    %v644 = vmul.f32 %v580, 0.5
    %v645 = vmul.f32 %v581, 0.5
    %v646 = vmul.f32 %v582, 0.5
    %v647 = vmul.f32 %v583, 0.5
    %v648 = vmul.f32 %v584, 0.5
    %v649 = vmul.f32 %v585, 0.5
    %v650 = vmul.f32 %v586, 0.5
    %v651 = vmul.f32 %v587, 0.5
    %v652 = vmul.f32 %v588, 0.5
    %v653 = vmul.f32 %v589, 0.5
    %v654 = vmul.f32 %v590, 0.5
    %v655 = vmul.f32 %v591, 0.5
    %v656 = vmul.f32 %v592, 0.5
    %v657 = vmul.f32 %v242, %v593
    %v658 = vmul.f32 %v244, %v594
    %v659 = vmul.f32 %v247, %v595
    %v660 = vmul.f32 %v249, %v596
    %v661 = vmul.f32 %v252, %v597
    %v662 = vmul.f32 %v254, %v598
    %v663 = vmul.f32 %v257, %v599
    %v664 = vmul.f32 %v259, %v600
    %v665 = vmul.f32 %v262, %v601
    %v666 = vmul.f32 %v264, %v602
    %v667 = vmul.f32 %v267, %v603
    %v668 = vmul.f32 %v269, %v604
    %v669 = vmul.f32 %v272, %v605
    %v670 = vmul.f32 %v274, %v606
    %v671 = vmul.f32 %v277, %v607
    %v672 = vmul.f32 %v279, %v608
    %v673 = vmul.f32 %v282, %v609
    %v674 = vmul.f32 %v284, %v610
    %v675 = vmul.f32 %v287, %v611
    %v676 = vmul.f32 %v289, %v612
    %v677 = vmul.f32 %v292, %v613
    %v678 = vmul.f32 %v294, %v614
    %v679 = vmul.f32 %v297, %v615
    %v680 = vmul.f32 %v299, %v616
    %v681 = vmul.f32 %v302, %v617
    %v682 = vmul.f32 %v304, %v618
    %v683 = vmul.f32 %v307, %v619
    %v684 = vmul.f32 %v309, %v620
    %v685 = vmul.f32 %v312, %v621
    %v686 = vmul.f32 %v314, %v622
    %v687 = vmul.f32 %v317, %v623
    %v688 = vmul.f32 %v319, %v624
    %v689 = vmul.f32 %v322, %v625
    %v690 = vmul.f32 %v324, %v626
    %v691 = vmul.f32 %v327, %v627
    %v692 = vmul.f32 %v329, %v628
    %v693 = vmul.f32 %v332, %v629
    %v694 = vmul.f32 %v334, %v630
    %v695 = vmul.f32 %v337, %v631
    %v696 = vmul.f32 %v339, %v632
    %v697 = vmul.f32 %v342, %v633
    %v698 = vmul.f32 %v344, %v634
    %v699 = vmul.f32 %v347, %v635
    %v700 = vmul.f32 %v349, %v636
    %v701 = vmul.f32 %v352, %v637
    %v702 = vmul.f32 %v354, %v638
    %v703 = vmul.f32 %v357, %v639
    %v704 = vmul.f32 %v359, %v640
    %v705 = vmul.f32 %v362, %v641
    %v706 = vmul.f32 %v364, %v642
    %v707 = vmul.f32 %v367, %v643
    %v708 = vmul.f32 %v369, %v644
    %v709 = vmul.f32 %v372, %v645
    %v710 = vmul.f32 %v374, %v646
    %v711 = vmul.f32 %v377, %v647
    %v712 = vmul.f32 %v379, %v648
    %v713 = vmul.f32 %v382, %v649
    %v714 = vmul.f32 %v384, %v650
    %v715 = vmul.f32 %v387, %v651
    %v716 = vmul.f32 %v389, %v652
    %v717 = vmul.f32 %v392, %v653
    %v718 = vmul.f32 %v394, %v654
    %v719 = vmul.f32 %v397, %v655
    %v720 = vmul.f32 %v399, %v656
    %v721 = vpack.c.bf16 %v658, %v657
    %v722 = vpack.c.bf16 %v660, %v659
    %v723 = vpack.c.bf16 %v662, %v661
    %v724 = vpack.c.bf16 %v664, %v663
    %v725 = vpack.c.bf16 %v666, %v665
    %v726 = vpack.c.bf16 %v668, %v667
    %v727 = vpack.c.bf16 %v670, %v669
    %v728 = vpack.c.bf16 %v672, %v671
    %v729 = vpack.c.bf16 %v674, %v673
    %v730 = vpack.c.bf16 %v676, %v675
    %v731 = vpack.c.bf16 %v678, %v677
    %v732 = vpack.c.bf16 %v680, %v679
    %v733 = vpack.c.bf16 %v682, %v681
    %v734 = vpack.c.bf16 %v684, %v683
    %v735 = vpack.c.bf16 %v686, %v685
    %v736 = vpack.c.bf16 %v688, %v687
    %v737 = vpack.c.bf16 %v690, %v689
    %v738 = vpack.c.bf16 %v692, %v691
    %v739 = vpack.c.bf16 %v694, %v693
    %v740 = vpack.c.bf16 %v696, %v695
    %v741 = vpack.c.bf16 %v698, %v697
    %v742 = vpack.c.bf16 %v700, %v699
    %v743 = vpack.c.bf16 %v702, %v701
    %v744 = vpack.c.bf16 %v704, %v703
    %v745 = vpack.c.bf16 %v706, %v705
    %v746 = vpack.c.bf16 %v708, %v707
    %v747 = vpack.c.bf16 %v710, %v709
    %v748 = vpack.c.bf16 %v712, %v711
    %v749 = vpack.c.bf16 %v714, %v713
    %v750 = vpack.c.bf16 %v716, %v715
    %v751 = vpack.c.bf16 %v718, %v717
    %v752 = vpack.c.bf16 %v720, %v719
    %v753 = vld [vmem:[#allocation7] sm:$0xf]
    %v754 = vld [vmem:[#allocation7 + $0x4] sm:$0xf]
    %v755 = vld [vmem:[#allocation7 + $0x8] sm:$0xf]
    %v756 = vld [vmem:[#allocation7 + $0xc] sm:$0xf]
    %v757 = vld [vmem:[#allocation7 + $0x10] sm:$0xf]
    %v758 = vld [vmem:[#allocation7 + $0x14] sm:$0xf]
    %v759 = vld [vmem:[#allocation7 + $0x18] sm:$0xf]
    %v760 = vld [vmem:[#allocation7 + $0x1c] sm:$0xf]
    %v761 = vld [vmem:[#allocation7 + $0x20] sm:$0xf]
    %v762 = vld [vmem:[#allocation7 + $0x24] sm:$0xf]
    %v763 = vld [vmem:[#allocation7 + $0x28] sm:$0xf]
    %v764 = vld [vmem:[#allocation7 + $0x2c] sm:$0xf]
    %v765 = vld [vmem:[#allocation7 + $0x30] sm:$0xf]
    %v766 = vld [vmem:[#allocation7 + $0x34] sm:$0xf]
    %v767 = vld [vmem:[#allocation7 + $0x38] sm:$0xf]
    %v768 = vld [vmem:[#allocation7 + $0x3c] sm:$0xf]
    %v769 = vld [vmem:[%s4] sm:$0x1]
    %v771 = vperm.slane %v769, 0
    %v789 = vunpack.c.l.b16 %v753
    %v790 = vunpack.c.l.b16 %v754
    %v791 = vunpack.c.l.b16 %v755
    %v792 = vunpack.c.l.b16 %v756
    %v793 = vunpack.c.l.b16 %v757
    %v794 = vunpack.c.l.b16 %v758
    %v795 = vunpack.c.l.b16 %v759
    %v796 = vunpack.c.l.b16 %v760
    %v797 = vunpack.c.l.b16 %v761
    %v798 = vunpack.c.l.b16 %v762
    %v799 = vunpack.c.l.b16 %v763
    %v800 = vunpack.c.l.b16 %v764
    %v801 = vunpack.c.l.b16 %v765
    %v802 = vunpack.c.l.b16 %v766
    %v803 = vunpack.c.l.b16 %v767
    %v804 = vunpack.c.l.b16 %v768
    %v805 = vpack.c.b16 %v790, %v789
    %v806 = vpack.c.b16 %v792, %v791
    %v807 = vpack.c.b16 %v794, %v793
    %v808 = vpack.c.b16 %v796, %v795
    %v809 = vpack.c.b16 %v798, %v797
    %v810 = vpack.c.b16 %v800, %v799
    %v811 = vpack.c.b16 %v802, %v801
    %v812 = vpack.c.b16 %v804, %v803
    %821 = vmatpush.bf16.msra.mxu0 %v812
    %822 = vmatpush.bf16.msra.mxu0 %v811
    %823 = vmatpush.bf16.msra.mxu0 %v810
    %824 = vmatpush.bf16.msra.mxu0 %v809
    %825 = vmatpush.bf16.msra.mxu0 %v808
    %826 = vmatpush.bf16.msra.mxu0 %v807
    %827 = vmatpush.bf16.msra.mxu0 %v806
    %828 = vmatpush.bf16.msra.mxu0 %v805
    %829 = vmatmul.bf16.gmra.mxu0 %v721
    %v830 = vpop.f32.mrf.mxu0
    %v831 = vadd.f32 %v771, %v830
    %v832 = vpop.f32.mrf.mxu0
    %v833 = vadd.f32 %v771, %v832
    %834 = vmatmul.bf16.gmra.mxu0 %v722
    %v835 = vpop.f32.mrf.mxu0
    %v836 = vadd.f32 %v771, %v835
    %v837 = vpop.f32.mrf.mxu0
    %v838 = vadd.f32 %v771, %v837
    %839 = vmatmul.bf16.gmra.mxu0 %v723
    %v840 = vpop.f32.mrf.mxu0
    %v841 = vadd.f32 %v771, %v840
    %v842 = vpop.f32.mrf.mxu0
    %v843 = vadd.f32 %v771, %v842
    %844 = vmatmul.bf16.gmra.mxu0 %v724
    %v845 = vpop.f32.mrf.mxu0
    %v846 = vadd.f32 %v771, %v845
    %v847 = vpop.f32.mrf.mxu0
    %v848 = vadd.f32 %v771, %v847
    %849 = vmatmul.bf16.gmra.mxu0 %v725
    %v850 = vpop.f32.mrf.mxu0
    %v851 = vadd.f32 %v771, %v850
    %v852 = vpop.f32.mrf.mxu0
    %v853 = vadd.f32 %v771, %v852
    %854 = vmatmul.bf16.gmra.mxu0 %v726
    %v855 = vpop.f32.mrf.mxu0
    %v856 = vadd.f32 %v771, %v855
    %v857 = vpop.f32.mrf.mxu0
    %v858 = vadd.f32 %v771, %v857
    %859 = vmatmul.bf16.gmra.mxu0 %v727
    %v860 = vpop.f32.mrf.mxu0
    %v861 = vadd.f32 %v771, %v860
    %v862 = vpop.f32.mrf.mxu0
    %v863 = vadd.f32 %v771, %v862
    %864 = vmatmul.bf16.gmra.mxu0 %v728
    %v865 = vpop.f32.mrf.mxu0
    %v866 = vadd.f32 %v771, %v865
    %v867 = vpop.f32.mrf.mxu0
    %v868 = vadd.f32 %v771, %v867
    %869 = vmatmul.bf16.gmra.mxu0 %v729
    %v870 = vpop.f32.mrf.mxu0
    %v871 = vadd.f32 %v771, %v870
    %v872 = vpop.f32.mrf.mxu0
    %v873 = vadd.f32 %v771, %v872
    %874 = vmatmul.bf16.gmra.mxu0 %v730
    %v875 = vpop.f32.mrf.mxu0
    %v876 = vadd.f32 %v771, %v875
    %v877 = vpop.f32.mrf.mxu0
    %v878 = vadd.f32 %v771, %v877
    %879 = vmatmul.bf16.gmra.mxu0 %v731
    %v880 = vpop.f32.mrf.mxu0
    %v881 = vadd.f32 %v771, %v880
    %v882 = vpop.f32.mrf.mxu0
    %v883 = vadd.f32 %v771, %v882
    %884 = vmatmul.bf16.gmra.mxu0 %v732
    %v885 = vpop.f32.mrf.mxu0
    %v886 = vadd.f32 %v771, %v885
    %v887 = vpop.f32.mrf.mxu0
    %v888 = vadd.f32 %v771, %v887
    %889 = vmatmul.bf16.gmra.mxu0 %v733
    %v890 = vpop.f32.mrf.mxu0
    %v891 = vadd.f32 %v771, %v890
    %v892 = vpop.f32.mrf.mxu0
    %v893 = vadd.f32 %v771, %v892
    %894 = vmatmul.bf16.gmra.mxu0 %v734
    %v895 = vpop.f32.mrf.mxu0
    %v896 = vadd.f32 %v771, %v895
    %v897 = vpop.f32.mrf.mxu0
    %v898 = vadd.f32 %v771, %v897
    %899 = vmatmul.bf16.gmra.mxu0 %v735
    %v900 = vpop.f32.mrf.mxu0
    %v901 = vadd.f32 %v771, %v900
    %v902 = vpop.f32.mrf.mxu0
    %v903 = vadd.f32 %v771, %v902
    %904 = vmatmul.bf16.gmra.mxu0 %v736
    %v905 = vpop.f32.mrf.mxu0
    %v906 = vadd.f32 %v771, %v905
    %v907 = vpop.f32.mrf.mxu0
    %v908 = vadd.f32 %v771, %v907
    %909 = vmatmul.bf16.gmra.mxu0 %v737
    %v910 = vpop.f32.mrf.mxu0
    %v911 = vadd.f32 %v771, %v910
    %v912 = vpop.f32.mrf.mxu0
    %v913 = vadd.f32 %v771, %v912
    %914 = vmatmul.bf16.gmra.mxu0 %v738
    %v915 = vpop.f32.mrf.mxu0
    %v916 = vadd.f32 %v771, %v915
    %v917 = vpop.f32.mrf.mxu0
    %v918 = vadd.f32 %v771, %v917
    %919 = vmatmul.bf16.gmra.mxu0 %v739
    %v920 = vpop.f32.mrf.mxu0
    %v921 = vadd.f32 %v771, %v920
    %v922 = vpop.f32.mrf.mxu0
    %v923 = vadd.f32 %v771, %v922
    %924 = vmatmul.bf16.gmra.mxu0 %v740
    %v925 = vpop.f32.mrf.mxu0
    %v926 = vadd.f32 %v771, %v925
    %v927 = vpop.f32.mrf.mxu0
    %v928 = vadd.f32 %v771, %v927
    %929 = vmatmul.bf16.gmra.mxu0 %v741
    %v930 = vpop.f32.mrf.mxu0
    %v931 = vadd.f32 %v771, %v930
    %v932 = vpop.f32.mrf.mxu0
    %v933 = vadd.f32 %v771, %v932
    %934 = vmatmul.bf16.gmra.mxu0 %v742
    %v935 = vpop.f32.mrf.mxu0
    %v936 = vadd.f32 %v771, %v935
    %v937 = vpop.f32.mrf.mxu0
    %v938 = vadd.f32 %v771, %v937
    %939 = vmatmul.bf16.gmra.mxu0 %v743
    %v940 = vpop.f32.mrf.mxu0
    %v941 = vadd.f32 %v771, %v940
    %v942 = vpop.f32.mrf.mxu0
    %v943 = vadd.f32 %v771, %v942
    %944 = vmatmul.bf16.gmra.mxu0 %v744
    %v945 = vpop.f32.mrf.mxu0
    %v946 = vadd.f32 %v771, %v945
    %v947 = vpop.f32.mrf.mxu0
    %v948 = vadd.f32 %v771, %v947
    %949 = vmatmul.bf16.gmra.mxu0 %v745
    %v950 = vpop.f32.mrf.mxu0
    %v951 = vadd.f32 %v771, %v950
    %v952 = vpop.f32.mrf.mxu0
    %v953 = vadd.f32 %v771, %v952
    %954 = vmatmul.bf16.gmra.mxu0 %v746
    %v955 = vpop.f32.mrf.mxu0
    %v956 = vadd.f32 %v771, %v955
    %v957 = vpop.f32.mrf.mxu0
    %v958 = vadd.f32 %v771, %v957
    %959 = vmatmul.bf16.gmra.mxu0 %v747
    %v960 = vpop.f32.mrf.mxu0
    %v961 = vadd.f32 %v771, %v960
    %v962 = vpop.f32.mrf.mxu0
    %v963 = vadd.f32 %v771, %v962
    %964 = vmatmul.bf16.gmra.mxu0 %v748
    %v965 = vpop.f32.mrf.mxu0
    %v966 = vadd.f32 %v771, %v965
    %v967 = vpop.f32.mrf.mxu0
    %v968 = vadd.f32 %v771, %v967
    %969 = vmatmul.bf16.gmra.mxu0 %v749
    %v970 = vpop.f32.mrf.mxu0
    %v971 = vadd.f32 %v771, %v970
    %v972 = vpop.f32.mrf.mxu0
    %v973 = vadd.f32 %v771, %v972
    %974 = vmatmul.bf16.gmra.mxu0 %v750
    %v975 = vpop.f32.mrf.mxu0
    %v976 = vadd.f32 %v771, %v975
    %v977 = vpop.f32.mrf.mxu0
    %v978 = vadd.f32 %v771, %v977
    %979 = vmatmul.bf16.gmra.mxu0 %v751
    %v980 = vpop.f32.mrf.mxu0
    %v981 = vadd.f32 %v771, %v980
    %v982 = vpop.f32.mrf.mxu0
    %v983 = vadd.f32 %v771, %v982
    %984 = vmatmul.bf16.gmra.mxu0 %v752
    %v985 = vpop.f32.mrf.mxu0
    %v986 = vadd.f32 %v771, %v985
    %v987 = vpop.f32.mrf.mxu0
    %v988 = vadd.f32 %v771, %v987
    %989 = vdwg.mxu0
    %v990 = vmul.f32 %v831, 0.5
    %v991 = vmul.f32 %v833, 0.5
    %v992 = vmul.f32 %v836, 0.5
    %v993 = vmul.f32 %v838, 0.5
    %v994 = vmul.f32 %v841, 0.5
    %v995 = vmul.f32 %v843, 0.5
    %v996 = vmul.f32 %v846, 0.5
    %v997 = vmul.f32 %v848, 0.5
    %v998 = vmul.f32 %v851, 0.5
    %v999 = vmul.f32 %v853, 0.5
    %v1000 = vmul.f32 %v856, 0.5
    %v1001 = vmul.f32 %v858, 0.5
    %v1002 = vmul.f32 %v861, 0.5
    %v1003 = vmul.f32 %v863, 0.5
    %v1004 = vmul.f32 %v866, 0.5
    %v1005 = vmul.f32 %v868, 0.5
    %v1006 = vmul.f32 %v871, 0.5
    %v1007 = vmul.f32 %v873, 0.5
    %v1008 = vmul.f32 %v876, 0.5
    %v1009 = vmul.f32 %v878, 0.5
    %v1010 = vmul.f32 %v881, 0.5
    %v1011 = vmul.f32 %v883, 0.5
    %v1012 = vmul.f32 %v886, 0.5
    %v1013 = vmul.f32 %v888, 0.5
    %v1014 = vmul.f32 %v891, 0.5
    %v1015 = vmul.f32 %v893, 0.5
    %v1016 = vmul.f32 %v896, 0.5
    %v1017 = vmul.f32 %v898, 0.5
    %v1018 = vmul.f32 %v901, 0.5
    %v1019 = vmul.f32 %v903, 0.5
    %v1020 = vmul.f32 %v906, 0.5
    %v1021 = vmul.f32 %v908, 0.5
    %v1022 = vmul.f32 %v911, 0.5
    %v1023 = vmul.f32 %v913, 0.5
    %v1024 = vmul.f32 %v916, 0.5
    %v1025 = vmul.f32 %v918, 0.5
    %v1026 = vmul.f32 %v921, 0.5
    %v1027 = vmul.f32 %v923, 0.5
    %v1028 = vmul.f32 %v926, 0.5
    %v1029 = vmul.f32 %v928, 0.5
    %v1030 = vmul.f32 %v931, 0.5
    %v1031 = vmul.f32 %v933, 0.5
    %v1032 = vmul.f32 %v936, 0.5
    %v1033 = vmul.f32 %v938, 0.5
    %v1034 = vmul.f32 %v941, 0.5
    %v1035 = vmul.f32 %v943, 0.5
    %v1036 = vmul.f32 %v946, 0.5
    %v1037 = vmul.f32 %v948, 0.5
    %v1038 = vmul.f32 %v951, 0.5
    %v1039 = vmul.f32 %v953, 0.5
    %v1040 = vmul.f32 %v956, 0.5
    %v1041 = vmul.f32 %v958, 0.5
    %v1042 = vmul.f32 %v961, 0.5
    %v1043 = vmul.f32 %v963, 0.5
    %v1044 = vmul.f32 %v966, 0.5
    %v1045 = vmul.f32 %v968, 0.5
    %v1046 = vmul.f32 %v971, 0.5
    %v1047 = vmul.f32 %v973, 0.5
    %v1048 = vmul.f32 %v976, 0.5
    %v1049 = vmul.f32 %v978, 0.5
    %v1050 = vmul.f32 %v981, 0.5
    %v1051 = vmul.f32 %v983, 0.5
    %v1052 = vmul.f32 %v986, 0.5
    %v1053 = vmul.f32 %v988, 0.5
    %v1054 = vtanh.pop %v990
    %v1055 = vtanh.pop %v991
    %v1056 = vtanh.pop %v992
    %v1057 = vtanh.pop %v993
    %v1058 = vtanh.pop %v994
    %v1059 = vtanh.pop %v995
    %v1060 = vtanh.pop %v996
    %v1061 = vtanh.pop %v997
    %v1062 = vtanh.pop %v998
    %v1063 = vtanh.pop %v999
    %v1064 = vtanh.pop %v1000
    %v1065 = vtanh.pop %v1001
    %v1066 = vtanh.pop %v1002
    %v1067 = vtanh.pop %v1003
    %v1068 = vtanh.pop %v1004
    %v1069 = vtanh.pop %v1005
    %v1070 = vtanh.pop %v1006
    %v1071 = vtanh.pop %v1007
    %v1072 = vtanh.pop %v1008
    %v1073 = vtanh.pop %v1009
    %v1074 = vtanh.pop %v1010
    %v1075 = vtanh.pop %v1011
    %v1076 = vtanh.pop %v1012
    %v1077 = vtanh.pop %v1013
    %v1078 = vtanh.pop %v1014
    %v1079 = vtanh.pop %v1015
    %v1080 = vtanh.pop %v1016
    %v1081 = vtanh.pop %v1017
    %v1082 = vtanh.pop %v1018
    %v1083 = vtanh.pop %v1019
    %v1084 = vtanh.pop %v1020
    %v1085 = vtanh.pop %v1021
    %v1086 = vtanh.pop %v1022
    %v1087 = vtanh.pop %v1023
    %v1088 = vtanh.pop %v1024
    %v1089 = vtanh.pop %v1025
    %v1090 = vtanh.pop %v1026
    %v1091 = vtanh.pop %v1027
    %v1092 = vtanh.pop %v1028
    %v1093 = vtanh.pop %v1029
    %v1094 = vtanh.pop %v1030
    %v1095 = vtanh.pop %v1031
    %v1096 = vtanh.pop %v1032
    %v1097 = vtanh.pop %v1033
    %v1098 = vtanh.pop %v1034
    %v1099 = vtanh.pop %v1035
    %v1100 = vtanh.pop %v1036
    %v1101 = vtanh.pop %v1037
    %v1102 = vtanh.pop %v1038
    %v1103 = vtanh.pop %v1039
    %v1104 = vtanh.pop %v1040
    %v1105 = vtanh.pop %v1041
    %v1106 = vtanh.pop %v1042
    %v1107 = vtanh.pop %v1043
    %v1108 = vtanh.pop %v1044
    %v1109 = vtanh.pop %v1045
    %v1110 = vtanh.pop %v1046
    %v1111 = vtanh.pop %v1047
    %v1112 = vtanh.pop %v1048
    %v1113 = vtanh.pop %v1049
    %v1114 = vtanh.pop %v1050
    %v1115 = vtanh.pop %v1051
    %v1116 = vtanh.pop %v1052
    %v1117 = vtanh.pop %v1053
    %v1118 = vadd.f32 %v1054, 1.0
    %v1119 = vadd.f32 %v1055, 1.0
    %v1120 = vadd.f32 %v1056, 1.0
    %v1121 = vadd.f32 %v1057, 1.0
    %v1122 = vadd.f32 %v1058, 1.0
    %v1123 = vadd.f32 %v1059, 1.0
    %v1124 = vadd.f32 %v1060, 1.0
    %v1125 = vadd.f32 %v1061, 1.0
    %v1126 = vadd.f32 %v1062, 1.0
    %v1127 = vadd.f32 %v1063, 1.0
    %v1128 = vadd.f32 %v1064, 1.0
    %v1129 = vadd.f32 %v1065, 1.0
    %v1130 = vadd.f32 %v1066, 1.0
    %v1131 = vadd.f32 %v1067, 1.0
    %v1132 = vadd.f32 %v1068, 1.0
    %v1133 = vadd.f32 %v1069, 1.0
    %v1134 = vadd.f32 %v1070, 1.0
    %v1135 = vadd.f32 %v1071, 1.0
    %v1136 = vadd.f32 %v1072, 1.0
    %v1137 = vadd.f32 %v1073, 1.0
    %v1138 = vadd.f32 %v1074, 1.0
    %v1139 = vadd.f32 %v1075, 1.0
    %v1140 = vadd.f32 %v1076, 1.0
    %v1141 = vadd.f32 %v1077, 1.0
    %v1142 = vadd.f32 %v1078, 1.0
    %v1143 = vadd.f32 %v1079, 1.0
    %v1144 = vadd.f32 %v1080, 1.0
    %v1145 = vadd.f32 %v1081, 1.0
    %v1146 = vadd.f32 %v1082, 1.0
    %v1147 = vadd.f32 %v1083, 1.0
    %v1148 = vadd.f32 %v1084, 1.0
    %v1149 = vadd.f32 %v1085, 1.0
    %v1150 = vadd.f32 %v1086, 1.0
    %v1151 = vadd.f32 %v1087, 1.0
    %v1152 = vadd.f32 %v1088, 1.0
    %v1153 = vadd.f32 %v1089, 1.0
    %v1154 = vadd.f32 %v1090, 1.0
    %v1155 = vadd.f32 %v1091, 1.0
    %v1156 = vadd.f32 %v1092, 1.0
    %v1157 = vadd.f32 %v1093, 1.0
    %v1158 = vadd.f32 %v1094, 1.0
    %v1159 = vadd.f32 %v1095, 1.0
    %v1160 = vadd.f32 %v1096, 1.0
    %v1161 = vadd.f32 %v1097, 1.0
    %v1162 = vadd.f32 %v1098, 1.0
    %v1163 = vadd.f32 %v1099, 1.0
    %v1164 = vadd.f32 %v1100, 1.0
    %v1165 = vadd.f32 %v1101, 1.0
    %v1166 = vadd.f32 %v1102, 1.0
    %v1167 = vadd.f32 %v1103, 1.0
    %v1168 = vadd.f32 %v1104, 1.0
    %v1169 = vadd.f32 %v1105, 1.0
    %v1170 = vadd.f32 %v1106, 1.0
    %v1171 = vadd.f32 %v1107, 1.0
    %v1172 = vadd.f32 %v1108, 1.0
    %v1173 = vadd.f32 %v1109, 1.0
    %v1174 = vadd.f32 %v1110, 1.0
    %v1175 = vadd.f32 %v1111, 1.0
    %v1176 = vadd.f32 %v1112, 1.0
    %v1177 = vadd.f32 %v1113, 1.0
    %v1178 = vadd.f32 %v1114, 1.0
    %v1179 = vadd.f32 %v1115, 1.0
    %v1180 = vadd.f32 %v1116, 1.0
    %v1181 = vadd.f32 %v1117, 1.0
    %v1182 = vmul.f32 %v1118, 0.5
    %v1183 = vmul.f32 %v1119, 0.5
    %v1184 = vmul.f32 %v1120, 0.5
    %v1185 = vmul.f32 %v1121, 0.5
    %v1186 = vmul.f32 %v1122, 0.5
    %v1187 = vmul.f32 %v1123, 0.5
    %v1188 = vmul.f32 %v1124, 0.5
    %v1189 = vmul.f32 %v1125, 0.5
    %v1190 = vmul.f32 %v1126, 0.5
    %v1191 = vmul.f32 %v1127, 0.5
    %v1192 = vmul.f32 %v1128, 0.5
    %v1193 = vmul.f32 %v1129, 0.5
    %v1194 = vmul.f32 %v1130, 0.5
    %v1195 = vmul.f32 %v1131, 0.5
    %v1196 = vmul.f32 %v1132, 0.5
    %v1197 = vmul.f32 %v1133, 0.5
    %v1198 = vmul.f32 %v1134, 0.5
    %v1199 = vmul.f32 %v1135, 0.5
    %v1200 = vmul.f32 %v1136, 0.5
    %v1201 = vmul.f32 %v1137, 0.5
    %v1202 = vmul.f32 %v1138, 0.5
    %v1203 = vmul.f32 %v1139, 0.5
    %v1204 = vmul.f32 %v1140, 0.5
    %v1205 = vmul.f32 %v1141, 0.5
    %v1206 = vmul.f32 %v1142, 0.5
    %v1207 = vmul.f32 %v1143, 0.5
    %v1208 = vmul.f32 %v1144, 0.5
    %v1209 = vmul.f32 %v1145, 0.5
    %v1210 = vmul.f32 %v1146, 0.5
    %v1211 = vmul.f32 %v1147, 0.5
    %v1212 = vmul.f32 %v1148, 0.5
    %v1213 = vmul.f32 %v1149, 0.5
    %v1214 = vmul.f32 %v1150, 0.5
    %v1215 = vmul.f32 %v1151, 0.5
    %v1216 = vmul.f32 %v1152, 0.5
    %v1217 = vmul.f32 %v1153, 0.5
    %v1218 = vmul.f32 %v1154, 0.5
    %v1219 = vmul.f32 %v1155, 0.5
    %v1220 = vmul.f32 %v1156, 0.5
    %v1221 = vmul.f32 %v1157, 0.5
    %v1222 = vmul.f32 %v1158, 0.5
    %v1223 = vmul.f32 %v1159, 0.5
    %v1224 = vmul.f32 %v1160, 0.5
    %v1225 = vmul.f32 %v1161, 0.5
    %v1226 = vmul.f32 %v1162, 0.5
    %v1227 = vmul.f32 %v1163, 0.5
    %v1228 = vmul.f32 %v1164, 0.5
    %v1229 = vmul.f32 %v1165, 0.5
    %v1230 = vmul.f32 %v1166, 0.5
    %v1231 = vmul.f32 %v1167, 0.5
    %v1232 = vmul.f32 %v1168, 0.5
    %v1233 = vmul.f32 %v1169, 0.5
    %v1234 = vmul.f32 %v1170, 0.5
    %v1235 = vmul.f32 %v1171, 0.5
    %v1236 = vmul.f32 %v1172, 0.5
    %v1237 = vmul.f32 %v1173, 0.5
    %v1238 = vmul.f32 %v1174, 0.5
    %v1239 = vmul.f32 %v1175, 0.5
    %v1240 = vmul.f32 %v1176, 0.5
    %v1241 = vmul.f32 %v1177, 0.5
    %v1242 = vmul.f32 %v1178, 0.5
    %v1243 = vmul.f32 %v1179, 0.5
    %v1244 = vmul.f32 %v1180, 0.5
    %v1245 = vmul.f32 %v1181, 0.5
    %v1246 = vmul.f32 %v831, %v1182
    %v1247 = vmul.f32 %v833, %v1183
    %v1248 = vmul.f32 %v836, %v1184
    %v1249 = vmul.f32 %v838, %v1185
    %v1250 = vmul.f32 %v841, %v1186
    %v1251 = vmul.f32 %v843, %v1187
    %v1252 = vmul.f32 %v846, %v1188
    %v1253 = vmul.f32 %v848, %v1189
    %v1254 = vmul.f32 %v851, %v1190
    %v1255 = vmul.f32 %v853, %v1191
    %v1256 = vmul.f32 %v856, %v1192
    %v1257 = vmul.f32 %v858, %v1193
    %v1258 = vmul.f32 %v861, %v1194
    %v1259 = vmul.f32 %v863, %v1195
    %v1260 = vmul.f32 %v866, %v1196
    %v1261 = vmul.f32 %v868, %v1197
    %v1262 = vmul.f32 %v871, %v1198
    %v1263 = vmul.f32 %v873, %v1199
    %v1264 = vmul.f32 %v876, %v1200
    %v1265 = vmul.f32 %v878, %v1201
    %v1266 = vmul.f32 %v881, %v1202
    %v1267 = vmul.f32 %v883, %v1203
    %v1268 = vmul.f32 %v886, %v1204
    %v1269 = vmul.f32 %v888, %v1205
    %v1270 = vmul.f32 %v891, %v1206
    %v1271 = vmul.f32 %v893, %v1207
    %v1272 = vmul.f32 %v896, %v1208
    %v1273 = vmul.f32 %v898, %v1209
    %v1274 = vmul.f32 %v901, %v1210
    %v1275 = vmul.f32 %v903, %v1211
    %v1276 = vmul.f32 %v906, %v1212
    %v1277 = vmul.f32 %v908, %v1213
    %v1278 = vmul.f32 %v911, %v1214
    %v1279 = vmul.f32 %v913, %v1215
    %v1280 = vmul.f32 %v916, %v1216
    %v1281 = vmul.f32 %v918, %v1217
    %v1282 = vmul.f32 %v921, %v1218
    %v1283 = vmul.f32 %v923, %v1219
    %v1284 = vmul.f32 %v926, %v1220
    %v1285 = vmul.f32 %v928, %v1221
    %v1286 = vmul.f32 %v931, %v1222
    %v1287 = vmul.f32 %v933, %v1223
    %v1288 = vmul.f32 %v936, %v1224
    %v1289 = vmul.f32 %v938, %v1225
    %v1290 = vmul.f32 %v941, %v1226
    %v1291 = vmul.f32 %v943, %v1227
    %v1292 = vmul.f32 %v946, %v1228
    %v1293 = vmul.f32 %v948, %v1229
    %v1294 = vmul.f32 %v951, %v1230
    %v1295 = vmul.f32 %v953, %v1231
    %v1296 = vmul.f32 %v956, %v1232
    %v1297 = vmul.f32 %v958, %v1233
    %v1298 = vmul.f32 %v961, %v1234
    %v1299 = vmul.f32 %v963, %v1235
    %v1300 = vmul.f32 %v966, %v1236
    %v1301 = vmul.f32 %v968, %v1237
    %v1302 = vmul.f32 %v971, %v1238
    %v1303 = vmul.f32 %v973, %v1239
    %v1304 = vmul.f32 %v976, %v1240
    %v1305 = vmul.f32 %v978, %v1241
    %v1306 = vmul.f32 %v981, %v1242
    %v1307 = vmul.f32 %v983, %v1243
    %v1308 = vmul.f32 %v986, %v1244
    %v1309 = vmul.f32 %v988, %v1245
    %v1310 = vadd.f32 %v68, %v1246
    %v1311 = vadd.f32 %v69, %v1247
    %v1312 = vadd.f32 %v70, %v1248
    %v1313 = vadd.f32 %v71, %v1249
    %v1314 = vadd.f32 %v72, %v1250
    %v1315 = vadd.f32 %v73, %v1251
    %v1316 = vadd.f32 %v74, %v1252
    %v1317 = vadd.f32 %v75, %v1253
    %v1318 = vadd.f32 %v76, %v1254
    %v1319 = vadd.f32 %v77, %v1255
    %v1320 = vadd.f32 %v78, %v1256
    %v1321 = vadd.f32 %v79, %v1257
    %v1322 = vadd.f32 %v80, %v1258
    %v1323 = vadd.f32 %v81, %v1259
    %v1324 = vadd.f32 %v82, %v1260
    %v1325 = vadd.f32 %v83, %v1261
    %v1326 = vadd.f32 %v84, %v1262
    %v1327 = vadd.f32 %v85, %v1263
    %v1328 = vadd.f32 %v86, %v1264
    %v1329 = vadd.f32 %v87, %v1265
    %v1330 = vadd.f32 %v88, %v1266
    %v1331 = vadd.f32 %v89, %v1267
    %v1332 = vadd.f32 %v90, %v1268
    %v1333 = vadd.f32 %v91, %v1269
    %v1334 = vadd.f32 %v92, %v1270
    %v1335 = vadd.f32 %v93, %v1271
    %v1336 = vadd.f32 %v94, %v1272
    %v1337 = vadd.f32 %v95, %v1273
    %v1338 = vadd.f32 %v96, %v1274
    %v1339 = vadd.f32 %v97, %v1275
    %v1340 = vadd.f32 %v98, %v1276
    %v1341 = vadd.f32 %v99, %v1277
    %v1342 = vadd.f32 %v100, %v1278
    %v1343 = vadd.f32 %v101, %v1279
    %v1344 = vadd.f32 %v102, %v1280
    %v1345 = vadd.f32 %v103, %v1281
    %v1346 = vadd.f32 %v104, %v1282
    %v1347 = vadd.f32 %v105, %v1283
    %v1348 = vadd.f32 %v106, %v1284
    %v1349 = vadd.f32 %v107, %v1285
    %v1350 = vadd.f32 %v108, %v1286
    %v1351 = vadd.f32 %v109, %v1287
    %v1352 = vadd.f32 %v110, %v1288
    %v1353 = vadd.f32 %v111, %v1289
    %v1354 = vadd.f32 %v112, %v1290
    %v1355 = vadd.f32 %v113, %v1291
    %v1356 = vadd.f32 %v114, %v1292
    %v1357 = vadd.f32 %v115, %v1293
    %v1358 = vadd.f32 %v116, %v1294
    %v1359 = vadd.f32 %v117, %v1295
    %v1360 = vadd.f32 %v118, %v1296
    %v1361 = vadd.f32 %v119, %v1297
    %v1362 = vadd.f32 %v120, %v1298
    %v1363 = vadd.f32 %v121, %v1299
    %v1364 = vadd.f32 %v122, %v1300
    %v1365 = vadd.f32 %v123, %v1301
    %v1366 = vadd.f32 %v124, %v1302
    %v1367 = vadd.f32 %v125, %v1303
    %v1368 = vadd.f32 %v126, %v1304
    %v1369 = vadd.f32 %v127, %v1305
    %v1370 = vadd.f32 %v128, %v1306
    %v1371 = vadd.f32 %v129, %v1307
    %v1372 = vadd.f32 %v130, %v1308
    %v1373 = vadd.f32 %v131, %v1309
    %1374 = vst [vmem:[#allocation8] sm:$0xff] %v1310
    %1375 = vst [vmem:[#allocation8 + $0x8] sm:$0xff] %v1311
    %1376 = vst [vmem:[#allocation8 + $0x10] sm:$0xff] %v1312
    %1377 = vst [vmem:[#allocation8 + $0x18] sm:$0xff] %v1313
    %1378 = vst [vmem:[#allocation8 + $0x20] sm:$0xff] %v1314
    %1379 = vst [vmem:[#allocation8 + $0x28] sm:$0xff] %v1315
    %1380 = vst [vmem:[#allocation8 + $0x30] sm:$0xff] %v1316
    %1381 = vst [vmem:[#allocation8 + $0x38] sm:$0xff] %v1317
    %1382 = vst [vmem:[#allocation8 + $0x40] sm:$0xff] %v1318
    %1383 = vst [vmem:[#allocation8 + $0x48] sm:$0xff] %v1319
    %1384 = vst [vmem:[#allocation8 + $0x50] sm:$0xff] %v1320
    %1385 = vst [vmem:[#allocation8 + $0x58] sm:$0xff] %v1321
    %1386 = vst [vmem:[#allocation8 + $0x60] sm:$0xff] %v1322
    %1387 = vst [vmem:[#allocation8 + $0x68] sm:$0xff] %v1323
    %1388 = vst [vmem:[#allocation8 + $0x70] sm:$0xff] %v1324
    %1389 = vst [vmem:[#allocation8 + $0x78] sm:$0xff] %v1325
    %1390 = vst [vmem:[#allocation8 + $0x80] sm:$0xff] %v1326
    %1391 = vst [vmem:[#allocation8 + $0x88] sm:$0xff] %v1327
    %1392 = vst [vmem:[#allocation8 + $0x90] sm:$0xff] %v1328
    %1393 = vst [vmem:[#allocation8 + $0x98] sm:$0xff] %v1329
    %1394 = vst [vmem:[#allocation8 + $0xa0] sm:$0xff] %v1330
    %1395 = vst [vmem:[#allocation8 + $0xa8] sm:$0xff] %v1331
    %1396 = vst [vmem:[#allocation8 + $0xb0] sm:$0xff] %v1332
    %1397 = vst [vmem:[#allocation8 + $0xb8] sm:$0xff] %v1333
    %1398 = vst [vmem:[#allocation8 + $0xc0] sm:$0xff] %v1334
    %1399 = vst [vmem:[#allocation8 + $0xc8] sm:$0xff] %v1335
    %1400 = vst [vmem:[#allocation8 + $0xd0] sm:$0xff] %v1336
    %1401 = vst [vmem:[#allocation8 + $0xd8] sm:$0xff] %v1337
    %1402 = vst [vmem:[#allocation8 + $0xe0] sm:$0xff] %v1338
    %1403 = vst [vmem:[#allocation8 + $0xe8] sm:$0xff] %v1339
    %1404 = vst [vmem:[#allocation8 + $0xf0] sm:$0xff] %v1340
    %1405 = vst [vmem:[#allocation8 + $0xf8] sm:$0xff] %v1341
    %1406 = vst [vmem:[#allocation8 + $0x100] sm:$0xff] %v1342
    %1407 = vst [vmem:[#allocation8 + $0x108] sm:$0xff] %v1343
    %1408 = vst [vmem:[#allocation8 + $0x110] sm:$0xff] %v1344
    %1409 = vst [vmem:[#allocation8 + $0x118] sm:$0xff] %v1345
    %1410 = vst [vmem:[#allocation8 + $0x120] sm:$0xff] %v1346
    %1411 = vst [vmem:[#allocation8 + $0x128] sm:$0xff] %v1347
    %1412 = vst [vmem:[#allocation8 + $0x130] sm:$0xff] %v1348
    %1413 = vst [vmem:[#allocation8 + $0x138] sm:$0xff] %v1349
    %1414 = vst [vmem:[#allocation8 + $0x140] sm:$0xff] %v1350
    %1415 = vst [vmem:[#allocation8 + $0x148] sm:$0xff] %v1351
    %1416 = vst [vmem:[#allocation8 + $0x150] sm:$0xff] %v1352
    %1417 = vst [vmem:[#allocation8 + $0x158] sm:$0xff] %v1353
    %1418 = vst [vmem:[#allocation8 + $0x160] sm:$0xff] %v1354
    %1419 = vst [vmem:[#allocation8 + $0x168] sm:$0xff] %v1355
    %1420 = vst [vmem:[#allocation8 + $0x170] sm:$0xff] %v1356
    %1421 = vst [vmem:[#allocation8 + $0x178] sm:$0xff] %v1357
    %1422 = vst [vmem:[#allocation8 + $0x180] sm:$0xff] %v1358
    %1423 = vst [vmem:[#allocation8 + $0x188] sm:$0xff] %v1359
    %1424 = vst [vmem:[#allocation8 + $0x190] sm:$0xff] %v1360
    %1425 = vst [vmem:[#allocation8 + $0x198] sm:$0xff] %v1361
    %1426 = vst [vmem:[#allocation8 + $0x1a0] sm:$0xff] %v1362
    %1427 = vst [vmem:[#allocation8 + $0x1a8] sm:$0xff] %v1363
    %1428 = vst [vmem:[#allocation8 + $0x1b0] sm:$0xff] %v1364
    %1429 = vst [vmem:[#allocation8 + $0x1b8] sm:$0xff] %v1365
    %1430 = vst [vmem:[#allocation8 + $0x1c0] sm:$0xff] %v1366
    %1431 = vst [vmem:[#allocation8 + $0x1c8] sm:$0xff] %v1367
    %1432 = vst [vmem:[#allocation8 + $0x1d0] sm:$0xff] %v1368
    %1433 = vst [vmem:[#allocation8 + $0x1d8] sm:$0xff] %v1369
    %1434 = vst [vmem:[#allocation8 + $0x1e0] sm:$0xff] %v1370
    %1435 = vst [vmem:[#allocation8 + $0x1e8] sm:$0xff] %v1371
    %1436 = vst [vmem:[#allocation8 + $0x1f0] sm:$0xff] %v1372
    %1437 = vst [vmem:[#allocation8 + $0x1f8] sm:$0xff] %v1373
    // Predicated region
    $region34: #{tpu_custom_call.1} parent=1 // pred_check
      _
    $region35: #{tpu_custom_call.1} parent=1 // pred_check_branch
      %1439 = sbr.rel (0) target = $region37
    $region36: #{tpu_custom_call.1} parent=1 // pred_region
      %1441 = vsyncadd [#allocation4], 0
      %s1442 = sshll.u32 [#allocation8], 4
      %s1443 = int_to_ptr.vmem [resolvable:$true] %s1442
      %s1444 = sshll.u32 %s5, 4
      %s1445 = int_to_ptr.hbm [resolvable:$true] %s1444
      %1450 = dma.vmem_to_hbm [thread:$0]  %s1443, 8192, %s1445, [#allocation4], 128, 128, 8
    $region37: #{tpu_custom_call.1} parent=1 // pred_fallthru
      _
    // Predicated region
    $region38: #{tpu_custom_call.1} parent=1 // pred_check
      _
    $region39: #{tpu_custom_call.1} parent=1 // pred_check_branch
      %1452 = sbr.rel (0) target = $region41
    $region40: #{tpu_custom_call.1} parent=1 // pred_region
      %1454 = dma.done [#allocation4], 8192
    $region41: #{tpu_custom_call.1} parent=1 // pred_fallthru
      _
    %1455 = vsyncpa [#allocation3], 1
    %1456 = vsyncpa [#allocation6], 1
    %1457 = vsyncpa [#allocation4], 1

</llo_original>
